<compile_context>
chip_gen: v6e
topology: v6e:2x2x1
jax: 0.10.0
libtpu: 0.0.40
codegen_flags: <defaults>
</compile_context>

<pallas_src>
import functools
import math

import jax
import jax.numpy as jnp
from jax.experimental import pallas as pl
from jax.experimental.pallas import tpu as pltpu

LN_EPS = 1e-5                       # torch.nn.LayerNorm default
MATMUL_DTYPE = jnp.bfloat16         # MXU input dtype; accumulation stays f32


def _round_up(n, m):
    return ((n + m - 1) // m) * m


def _layer_norm(x, gamma, beta):
    mu = jnp.mean(x, axis=-1, keepdims=True)
    var = jnp.mean((x - mu) ** 2, axis=-1, keepdims=True)   # biased, like torch
    return (x - mu) * jax.lax.rsqrt(var + LN_EPS) * gamma + beta


def _erf(x):
    # A&S 7.1.26 polynomial (abs err ~1.5e-7 before the approx reciprocal);
    # the divide is moved to the EUP via pl.reciprocal(approx=True).
    sign = jnp.where(x >= 0.0, 1.0, -1.0)
    ax = jnp.abs(x)
    t = pl.reciprocal(1.0 + 0.3275911 * ax, approx=True)
    poly = t * (0.254829592 + t * (-0.284496736 + t * (1.421413741
               + t * (-1.453152027 + t * 1.061405429))))
    return sign * (1.0 - poly * jnp.exp(-ax * ax))


def _gelu_exact(x):
    # torch.nn.GELU default (erf-based)
    return 0.5 * x * (1.0 + _erf(x * (1.0 / math.sqrt(2.0))))


# ----------------------------------------------------------------------------
# Fused transformer kernel: grid = (batch_tiles, depth)
# ----------------------------------------------------------------------------
def transformer_kernel(x_ref, wqkv_ref, wo_ref, w1_ref, w2_ref, vec_ref,
                       o_ref, x_acc,
                       *, heads, dim_head, dim, mlp_dim):
    d = pl.program_id(1)
    last = pl.num_programs(1) - 1

    # Load the input activation tile once, at the first layer of this batch tile.
    @pl.when(d == 0)
    def _():
        x_acc[...] = x_ref[...].astype(jnp.float32)

    x = x_acc[...]                                   # (tb, D) f32
    tb = x.shape[0]
    inner = heads * dim_head
    scale = 1.0 / math.sqrt(dim_head)

    # Unpack the small per-layer vectors (one sublane row each).
    vecs = vec_ref[...]                              # (8, W) f32
    a_g = vecs[0, :dim]
    a_b = vecs[1, :dim]
    bo = vecs[2, :dim]
    f_g = vecs[3, :dim]
    f_b = vecs[4, :dim]
    b2 = vecs[5, :dim]
    b1 = vecs[6, :mlp_dim]

    # ---------------- Attention block: Attn(LN(x)) + x ----------------
    xn = _layer_norm(x, a_g, a_b)                                     # f32
    qkv = jnp.dot(xn.astype(MATMUL_DTYPE), wqkv_ref[...],
                  preferred_element_type=jnp.float32)                 # (tb, 3*inner)
    q = qkv[:, 0 * inner:1 * inner].reshape(tb, heads, dim_head).astype(MATMUL_DTYPE)
    k = qkv[:, 1 * inner:2 * inner].reshape(tb, heads, dim_head).astype(MATMUL_DTYPE)
    v = qkv[:, 2 * inner:3 * inner].reshape(tb, heads, dim_head).astype(MATMUL_DTYPE)

    # scores over the head axis: (tb, H, H); single softmax, single exp.
    s = jnp.einsum("bhd,bgd->bhg", q, k,
                   preferred_element_type=jnp.float32) * scale
    m = jnp.max(s, axis=-1, keepdims=True)
    e = jnp.exp(s - m)
    p = e * pl.reciprocal(jnp.sum(e, axis=-1, keepdims=True), approx=True)
    attn = jnp.einsum("bhg,bgd->bhd", p.astype(MATMUL_DTYPE), v,
                      preferred_element_type=jnp.float32).reshape(tb, inner)

    proj = jnp.dot(attn.astype(MATMUL_DTYPE), wo_ref[...],
                   preferred_element_type=jnp.float32) + bo
    x = x + proj                                      # dropout p=0 -> identity

    # ---------------- FeedForward block: FF(LN(x)) + x ----------------
    xn2 = _layer_norm(x, f_g, f_b)
    h = jnp.dot(xn2.astype(MATMUL_DTYPE), w1_ref[...],
                preferred_element_type=jnp.float32) + b1
    h = _gelu_exact(h)
    y = jnp.dot(h.astype(MATMUL_DTYPE), w2_ref[...],
                preferred_element_type=jnp.float32) + b2
    x = x + y

    # Keep the running activation in VMEM for the next layer; only write the
    # output block (HBM-resident across depth) once, on the final layer.
    @pl.when(d < last)
    def _():
        x_acc[...] = x

    @pl.when(d == last)
    def _():
        o_ref[...] = x.astype(o_ref.dtype)


# ----------------------------------------------------------------------------
# Wrapper
# ----------------------------------------------------------------------------
def _choose_batch_tile(B):
    # Weight-streaming arithmetic intensity ~ tb flop/byte; target ~256 (v5e),
    # ~512-768 (v6e), ~384 (v7x per TC).  512 covers all three; for B <= 512 use a
    # single tile so the stacked weights are streamed exactly once.
    TB_TARGET = 512
    if B <= TB_TARGET:
        return _round_up(max(B, 8), 8)
    return TB_TARGET


def transformer_forward(x, params, *, heads, dim_head):
    B, D = x.shape
    depth = params["wqkv"].shape[0]
    inner = heads * dim_head
    mlp = params["w1"].shape[-1]

    tb = _choose_batch_tile(B)
    Bp = _round_up(B, tb)
    if Bp != B:
        # Masked tail via zero padding (rows are independent; padded rows produce
        # finite garbage that is sliced off below).
        x = jnp.pad(x, ((0, Bp - B), (0, 0)))
    nb = Bp // tb

    def wspec(arr):
        # Per-layer stacked weight: squeeze the leading depth axis, stream layer d.
        return pl.BlockSpec((None,) + arr.shape[1:], lambda b, d: (d, 0, 0))

    in_specs = [
        pl.BlockSpec((tb, D), lambda b, d: (b, 0)),          # x (read once per tile)
        wspec(params["wqkv"]), wspec(params["wo"]),
        wspec(params["w1"]), wspec(params["w2"]),
        wspec(params["vec"]),
    ]
    out_specs = pl.BlockSpec((tb, D), lambda b, d: (b, 0))

    # VMEM budget: double-buffered per-layer weights + activations + slack.
    weight_keys = ("wqkv", "wo", "w1", "w2", "vec")
    bytes_per_layer = sum(int(params[k][0].size) * params[k].dtype.itemsize
                          for k in weight_keys)
    act_bytes = 4 * tb * (3 * D + 3 * inner + mlp)           # rough upper bound
    est = 2 * bytes_per_layer + 4 * act_bytes + (4 << 20)
    # Cap at 48 MiB: leaves headroom on v7x (64 MiB physical VMEM per TC) for
    # Mosaic internal scratch / semaphores.  Could be raised toward ~100 MiB on
    # v5e/v6e to buy a larger tb for big models.
    vmem_limit = int(min(max(est, 32 << 20), 48 << 20))
    # TODO(synk): if double-buffered per-layer weights exceed this budget, tile the
    # FF matmuls over mlp_dim (or raise pipeline depth with pl.Buffered(3) on the
    # big weight specs if profiling shows exposed weight DMA).

    kernel = functools.partial(transformer_kernel, heads=heads, dim_head=dim_head,
                               dim=D, mlp_dim=mlp)
    out = pl.pallas_call(
        kernel,
        out_shape=jax.ShapeDtypeStruct((Bp, D), jnp.float32),
        grid_spec=pltpu.PrefetchScalarGridSpec(
            num_scalar_prefetch=0,
            grid=(nb, depth),
            in_specs=in_specs,
            out_specs=out_specs,
            scratch_shapes=[pltpu.VMEM((tb, D), jnp.float32)],
        ),
        compiler_params=pltpu.CompilerParams(
            dimension_semantics=("parallel", "arbitrary"),
            vmem_limit_bytes=vmem_limit,
        ),
    )(x, params["wqkv"], params["wo"], params["w1"], params["w2"], params["vec"])
    return out[:B] if Bp != B else out


def init_params(key, dim, depth, heads, dim_head, mlp_dim):
    """Per-layer weights stacked along a leading depth axis.

    Linear weights are stored (in_features, out_features), i.e. transposed vs
    torch, so y = x @ W + b.  QKV weights are pre-concatenated.  Matmul weights
    are bf16; the small per-layer vectors (LN gamma/beta and biases) are packed
    into one f32 (depth, 8, W) array, one sublane row each:
      row 0: attn LN gamma, 1: attn LN beta, 2: attn out bias,
      row 3: ff LN gamma,   4: ff LN beta,   5: ff out bias (b2), 6: ff hidden bias (b1).
    """
    inner = heads * dim_head
    ks = jax.random.split(key, 7)
    wq = 0.05 * jax.random.normal(ks[0], (depth, dim, inner), jnp.float32)
    wk = 0.05 * jax.random.normal(ks[1], (depth, dim, inner), jnp.float32)
    wv = 0.05 * jax.random.normal(ks[2], (depth, dim, inner), jnp.float32)
    wqkv = jnp.concatenate([wq, wk, wv], axis=-1).astype(MATMUL_DTYPE)
    wo = (0.05 * jax.random.normal(ks[3], (depth, inner, dim),
                                   jnp.float32)).astype(MATMUL_DTYPE)
    w1 = (0.05 * jax.random.normal(ks[4], (depth, dim, mlp_dim),
                                   jnp.float32)).astype(MATMUL_DTYPE)
    w2 = (0.05 * jax.random.normal(ks[5], (depth, mlp_dim, dim),
                                   jnp.float32)).astype(MATMUL_DTYPE)

    W = max(dim, mlp_dim)
    vec = jnp.zeros((depth, 8, W), jnp.float32)
    vec = vec.at[:, 0, :dim].set(1.0)                         # attn LN gamma
    vec = vec.at[:, 3, :dim].set(1.0)                         # ff LN gamma
    bo = 0.05 * jax.random.normal(ks[6], (depth, dim), jnp.float32)
    vec = vec.at[:, 2, :dim].set(bo)                          # attn output bias
    # rows 1, 4 (LN betas) and 5, 6 (FF biases) stay zero, matching torch defaults.
    return dict(wqkv=wqkv, wo=wo, w1=w1, w2=w2, vec=vec)


if __name__ == "__main__":
    # Small, module-consistent shapes: the module's forward takes a 2-D x (batch, dim).
    B, DIM, DEPTH, HEADS, DIM_HEAD, MLP_DIM = 8, 32, 2, 2, 16, 64

    key = jax.random.PRNGKey(0)
    kx, kp = jax.random.split(key)
    x = jax.random.normal(kx, (B, DIM), jnp.float32)
    params = init_params(kp, DIM, DEPTH, HEADS, DIM_HEAD, MLP_DIM)

    out = transformer_forward(x, params, heads=HEADS, dim_head=DIM_HEAD)
    out = jax.block_until_ready(out)
    assert out.shape == (B, DIM) and out.dtype == jnp.float32
    assert bool(jnp.all(jnp.isfinite(out)))
    print("KERNEL_OK")
</pallas_src>

<mosaic_0001>
module attributes {stable_mosaic.version = 11 : i64} {
  func.func @transformer_kernel(%arg0: i32, %arg1: i32, %arg2: memref<8x32xf32, #tpu.memory_space<vmem>>, %arg3: memref<1x32x96xbf16, #tpu.memory_space<vmem>>, %arg4: memref<1x32x32xbf16, #tpu.memory_space<vmem>>, %arg5: memref<1x32x64xbf16, #tpu.memory_space<vmem>>, %arg6: memref<1x64x32xbf16, #tpu.memory_space<vmem>>, %arg7: memref<1x8x64xf32, #tpu.memory_space<vmem>>, %arg8: memref<8x32xf32, #tpu.memory_space<vmem>>, %arg9: memref<8x32xf32, #tpu.memory_space<vmem>>) attributes {dimension_semantics = [#tpu.dimension_semantics<parallel>, #tpu.dimension_semantics<arbitrary>], iteration_bounds = array<i64: 1, 2>, scalar_prefetch = 0 : i64, scratch_operands = 1 : i64, tpu.core_type = #tpu.core_type<tc>, window_params = [{transform_indices = @transform_0, window_bounds = array<i64: 8, 32>}, {transform_indices = @transform_1, window_bounds = array<i64: 1, 32, 96>}, {transform_indices = @transform_2, window_bounds = array<i64: 1, 32, 32>}, {transform_indices = @transform_3, window_bounds = array<i64: 1, 32, 64>}, {transform_indices = @transform_4, window_bounds = array<i64: 1, 64, 32>}, {transform_indices = @transform_5, window_bounds = array<i64: 1, 8, 64>}, {transform_indices = @transform_6, window_bounds = array<i64: 8, 32>}]} {
    %c0_i32 = arith.constant 0 : i32
    %0 = arith.cmpi eq, %arg1, %c0_i32 : i32
    %1 = arith.extui %0 : i1 to i32
    %c0_i32_0 = arith.constant 0 : i32
    %2 = arith.cmpi ne, %1, %c0_i32_0 : i32
    scf.if %2 {
      %c0_53 = arith.constant 0 : index
      %c0_54 = arith.constant 0 : index
      %166 = vector.load %arg2[%c0_53, %c0_54] : memref<8x32xf32, #tpu.memory_space<vmem>>, vector<8x32xf32>
      %c0_55 = arith.constant 0 : index
      %c0_56 = arith.constant 0 : index
      %167 = vector.load %arg9[%c0_55, %c0_56] : memref<8x32xf32, #tpu.memory_space<vmem>>, vector<8x32xf32>
      tpu.vector_store %arg9[%c0_55, %c0_56], %166 {strides = array<i32>} : memref<8x32xf32, #tpu.memory_space<vmem>>, vector<8x32xf32>,
    } else {
    }
    %c0 = arith.constant 0 : index
    %c0_1 = arith.constant 0 : index
    %3 = vector.load %arg9[%c0, %c0_1] : memref<8x32xf32, #tpu.memory_space<vmem>>, vector<8x32xf32>
    %c0_2 = arith.constant 0 : index
    %c0_3 = arith.constant 0 : index
    %c0_4 = arith.constant 0 : index
    %4 = vector.load %arg7[%c0_2, %c0_3, %c0_4] : memref<1x8x64xf32, #tpu.memory_space<vmem>>, vector<1x8x64xf32>
    %5 = vector.shape_cast %4 : vector<1x8x64xf32> to vector<8x64xf32>
    %6 = vector.extract_strided_slice %5 {offsets = [0, 0], sizes = [1, 32], strides = [1, 1]} : vector<8x64xf32> to vector<1x32xf32>
    %7 = vector.shape_cast %6 : vector<1x32xf32> to vector<32xf32>
    %8 = vector.extract_strided_slice %5 {offsets = [1, 0], sizes = [1, 32], strides = [1, 1]} : vector<8x64xf32> to vector<1x32xf32>
    %9 = vector.shape_cast %8 : vector<1x32xf32> to vector<32xf32>
    %10 = vector.extract_strided_slice %5 {offsets = [2, 0], sizes = [1, 32], strides = [1, 1]} : vector<8x64xf32> to vector<1x32xf32>
    %11 = vector.shape_cast %10 : vector<1x32xf32> to vector<32xf32>
    %12 = vector.extract_strided_slice %5 {offsets = [3, 0], sizes = [1, 32], strides = [1, 1]} : vector<8x64xf32> to vector<1x32xf32>
    %13 = vector.shape_cast %12 : vector<1x32xf32> to vector<32xf32>
    %14 = vector.extract_strided_slice %5 {offsets = [4, 0], sizes = [1, 32], strides = [1, 1]} : vector<8x64xf32> to vector<1x32xf32>
    %15 = vector.shape_cast %14 : vector<1x32xf32> to vector<32xf32>
    %16 = vector.extract_strided_slice %5 {offsets = [5, 0], sizes = [1, 32], strides = [1, 1]} : vector<8x64xf32> to vector<1x32xf32>
    %17 = vector.shape_cast %16 : vector<1x32xf32> to vector<32xf32>
    %18 = vector.extract_strided_slice %5 {offsets = [6, 0], sizes = [1, 64], strides = [1, 1]} : vector<8x64xf32> to vector<1x64xf32>
    %19 = vector.shape_cast %18 : vector<1x64xf32> to vector<64xf32>
    %cst = arith.constant dense<0.000000e+00> : vector<8xf32>
    %20 = vector.multi_reduction <add>, %3, %cst [1] : vector<8x32xf32> to vector<8xf32>
    %21 = vector.shape_cast %20 : vector<8xf32> to vector<8x1xf32>
    %cst_5 = arith.constant 3.200000e+01 : f32
    %22 = vector.broadcast %cst_5 : f32 to vector<8x1xf32>
    %23 = arith.divf %21, %22 : vector<8x1xf32>
    %24 = vector.broadcast %23 : vector<8x1xf32> to vector<8x32xf32>
    %25 = arith.subf %3, %24 : vector<8x32xf32>
    %26 = arith.mulf %25, %25 : vector<8x32xf32>
    %cst_6 = arith.constant dense<0.000000e+00> : vector<8xf32>
    %27 = vector.multi_reduction <add>, %26, %cst_6 [1] : vector<8x32xf32> to vector<8xf32>
    %28 = vector.shape_cast %27 : vector<8xf32> to vector<8x1xf32>
    %cst_7 = arith.constant 3.200000e+01 : f32
    %29 = vector.broadcast %cst_7 : f32 to vector<8x1xf32>
    %30 = arith.divf %28, %29 : vector<8x1xf32>
    %31 = vector.broadcast %23 : vector<8x1xf32> to vector<8x32xf32>
    %32 = arith.subf %3, %31 : vector<8x32xf32>
    %cst_8 = arith.constant 9.99999974E-6 : f32
    %33 = vector.broadcast %cst_8 : f32 to vector<8x1xf32>
    %34 = arith.addf %30, %33 : vector<8x1xf32>
    %35 = math.rsqrt %34 : vector<8x1xf32>
    %36 = vector.broadcast %35 : vector<8x1xf32> to vector<8x32xf32>
    %37 = arith.mulf %32, %36 : vector<8x32xf32>
    %38 = vector.shape_cast %7 : vector<32xf32> to vector<1x32xf32>
    %39 = vector.broadcast %38 : vector<1x32xf32> to vector<8x32xf32>
    %40 = arith.mulf %37, %39 : vector<8x32xf32>
    %41 = vector.shape_cast %9 : vector<32xf32> to vector<1x32xf32>
    %42 = vector.broadcast %41 : vector<1x32xf32> to vector<8x32xf32>
    %43 = arith.addf %40, %42 : vector<8x32xf32>
    %44 = arith.truncf %43 : vector<8x32xf32> to vector<8x32xbf16>
    %c0_9 = arith.constant 0 : index
    %c0_10 = arith.constant 0 : index
    %c0_11 = arith.constant 0 : index
    %45 = vector.load %arg3[%c0_9, %c0_10, %c0_11] : memref<1x32x96xbf16, #tpu.memory_space<vmem>>, vector<1x32x96xbf16>
    %46 = vector.shape_cast %45 : vector<1x32x96xbf16> to vector<32x96xbf16>
    %cst_12 = arith.constant dense<0.000000e+00> : vector<8x96xf32>
    %47 = tpu.matmul %44, %46, %cst_12 {dimension_numbers = #tpu.dot_dimension_numbers<[1], [0], [0], [1], [0, 0, 1, 1], [], []>} : vector<8x32xbf16>, vector<32x96xbf16>, vector<8x96xf32> -> vector<8x96xf32>
    %48 = vector.extract_strided_slice %47 {offsets = [0, 0], sizes = [8, 32], strides = [1, 1]} : vector<8x96xf32> to vector<8x32xf32>
    %49 = vector.shape_cast %48 : vector<8x32xf32> to vector<8x2x16xf32>
    %50 = arith.truncf %49 : vector<8x2x16xf32> to vector<8x2x16xbf16>
    %51 = vector.extract_strided_slice %47 {offsets = [0, 32], sizes = [8, 32], strides = [1, 1]} : vector<8x96xf32> to vector<8x32xf32>
    %52 = vector.shape_cast %51 : vector<8x32xf32> to vector<8x2x16xf32>
    %53 = arith.truncf %52 : vector<8x2x16xf32> to vector<8x2x16xbf16>
    %54 = vector.extract_strided_slice %47 {offsets = [0, 64], sizes = [8, 32], strides = [1, 1]} : vector<8x96xf32> to vector<8x32xf32>
    %55 = vector.shape_cast %54 : vector<8x32xf32> to vector<8x2x16xf32>
    %56 = arith.truncf %55 : vector<8x2x16xf32> to vector<8x2x16xbf16>
    "tpu.trace_start"() <{level = 10 : i32, message = "bhd,bgd->bhg"}> : () -> ()
    %cst_13 = arith.constant dense<0.000000e+00> : vector<8x2x2xf32>
    %57 = tpu.matmul %50, %53, %cst_13 {dimension_numbers = #tpu.dot_dimension_numbers<[2], [2], [1], [1], [0, 0, 0, 1, 1, 1], [0], [0]>} : vector<8x2x16xbf16>, vector<8x2x16xbf16>, vector<8x2x2xf32> -> vector<8x2x2xf32>
    "tpu.trace_stop"() : () -> ()
    %cst_14 = arith.constant 2.500000e-01 : f32
    %58 = vector.broadcast %cst_14 : f32 to vector<8x2x2xf32>
    %59 = arith.mulf %57, %58 : vector<8x2x2xf32>
    %cst_15 = arith.constant dense<0xFF800000> : vector<8x2xf32>
    %60 = vector.multi_reduction <maximumf>, %59, %cst_15 [2] : vector<8x2x2xf32> to vector<8x2xf32>
    %61 = vector.shape_cast %60 : vector<8x2xf32> to vector<8x2x1xf32>
    %62 = vector.broadcast %61 : vector<8x2x1xf32> to vector<8x2x2xf32>
    %63 = arith.subf %59, %62 : vector<8x2x2xf32>
    %64 = math.exp %63 : vector<8x2x2xf32>
    %cst_16 = arith.constant dense<0.000000e+00> : vector<8x2xf32>
    %65 = vector.multi_reduction <add>, %64, %cst_16 [2] : vector<8x2x2xf32> to vector<8x2xf32>
    %66 = vector.shape_cast %65 : vector<8x2xf32> to vector<8x2x1xf32>
    %67 = tpu.reciprocal %66 {approx = true} : vector<8x2x1xf32> -> vector<8x2x1xf32>
    %68 = vector.broadcast %67 : vector<8x2x1xf32> to vector<8x2x2xf32>
    %69 = arith.mulf %64, %68 : vector<8x2x2xf32>
    %70 = arith.truncf %69 : vector<8x2x2xf32> to vector<8x2x2xbf16>
    "tpu.trace_start"() <{level = 10 : i32, message = "bhg,bgd->bhd"}> : () -> ()
    %cst_17 = arith.constant dense<0.000000e+00> : vector<8x2x16xf32>
    %71 = tpu.matmul %70, %56, %cst_17 {dimension_numbers = #tpu.dot_dimension_numbers<[2], [1], [1], [2], [0, 0, 0, 1, 1, 2], [0], [0]>} : vector<8x2x2xbf16>, vector<8x2x16xbf16>, vector<8x2x16xf32> -> vector<8x2x16xf32>
    "tpu.trace_stop"() : () -> ()
    %72 = vector.shape_cast %71 : vector<8x2x16xf32> to vector<8x32xf32>
    %73 = arith.truncf %72 : vector<8x32xf32> to vector<8x32xbf16>
    %c0_18 = arith.constant 0 : index
    %c0_19 = arith.constant 0 : index
    %c0_20 = arith.constant 0 : index
    %74 = vector.load %arg4[%c0_18, %c0_19, %c0_20] : memref<1x32x32xbf16, #tpu.memory_space<vmem>>, vector<1x32x32xbf16>
    %75 = vector.shape_cast %74 : vector<1x32x32xbf16> to vector<32x32xbf16>
    %cst_21 = arith.constant dense<0.000000e+00> : vector<8x32xf32>
    %76 = tpu.matmul %73, %75, %cst_21 {dimension_numbers = #tpu.dot_dimension_numbers<[1], [0], [0], [1], [0, 0, 1, 1], [], []>} : vector<8x32xbf16>, vector<32x32xbf16>, vector<8x32xf32> -> vector<8x32xf32>
    %77 = vector.shape_cast %11 : vector<32xf32> to vector<1x32xf32>
    %78 = vector.broadcast %77 : vector<1x32xf32> to vector<8x32xf32>
    %79 = arith.addf %76, %78 : vector<8x32xf32>
    %80 = arith.addf %3, %79 : vector<8x32xf32>
    %cst_22 = arith.constant dense<0.000000e+00> : vector<8xf32>
    %81 = vector.multi_reduction <add>, %80, %cst_22 [1] : vector<8x32xf32> to vector<8xf32>
    %82 = vector.shape_cast %81 : vector<8xf32> to vector<8x1xf32>
    %cst_23 = arith.constant 3.200000e+01 : f32
    %83 = vector.broadcast %cst_23 : f32 to vector<8x1xf32>
    %84 = arith.divf %82, %83 : vector<8x1xf32>
    %85 = vector.broadcast %84 : vector<8x1xf32> to vector<8x32xf32>
    %86 = arith.subf %80, %85 : vector<8x32xf32>
    %87 = arith.mulf %86, %86 : vector<8x32xf32>
    %cst_24 = arith.constant dense<0.000000e+00> : vector<8xf32>
    %88 = vector.multi_reduction <add>, %87, %cst_24 [1] : vector<8x32xf32> to vector<8xf32>
    %89 = vector.shape_cast %88 : vector<8xf32> to vector<8x1xf32>
    %cst_25 = arith.constant 3.200000e+01 : f32
    %90 = vector.broadcast %cst_25 : f32 to vector<8x1xf32>
    %91 = arith.divf %89, %90 : vector<8x1xf32>
    %92 = vector.broadcast %84 : vector<8x1xf32> to vector<8x32xf32>
    %93 = arith.subf %80, %92 : vector<8x32xf32>
    %cst_26 = arith.constant 9.99999974E-6 : f32
    %94 = vector.broadcast %cst_26 : f32 to vector<8x1xf32>
    %95 = arith.addf %91, %94 : vector<8x1xf32>
    %96 = math.rsqrt %95 : vector<8x1xf32>
    %97 = vector.broadcast %96 : vector<8x1xf32> to vector<8x32xf32>
    %98 = arith.mulf %93, %97 : vector<8x32xf32>
    %99 = vector.shape_cast %13 : vector<32xf32> to vector<1x32xf32>
    %100 = vector.broadcast %99 : vector<1x32xf32> to vector<8x32xf32>
    %101 = arith.mulf %98, %100 : vector<8x32xf32>
    %102 = vector.shape_cast %15 : vector<32xf32> to vector<1x32xf32>
    %103 = vector.broadcast %102 : vector<1x32xf32> to vector<8x32xf32>
    %104 = arith.addf %101, %103 : vector<8x32xf32>
    %105 = arith.truncf %104 : vector<8x32xf32> to vector<8x32xbf16>
    %c0_27 = arith.constant 0 : index
    %c0_28 = arith.constant 0 : index
    %c0_29 = arith.constant 0 : index
    %106 = vector.load %arg5[%c0_27, %c0_28, %c0_29] : memref<1x32x64xbf16, #tpu.memory_space<vmem>>, vector<1x32x64xbf16>
    %107 = vector.shape_cast %106 : vector<1x32x64xbf16> to vector<32x64xbf16>
    %cst_30 = arith.constant dense<0.000000e+00> : vector<8x64xf32>
    %108 = tpu.matmul %105, %107, %cst_30 {dimension_numbers = #tpu.dot_dimension_numbers<[1], [0], [0], [1], [0, 0, 1, 1], [], []>} : vector<8x32xbf16>, vector<32x64xbf16>, vector<8x64xf32> -> vector<8x64xf32>
    %109 = vector.shape_cast %19 : vector<64xf32> to vector<1x64xf32>
    %110 = vector.broadcast %109 : vector<1x64xf32> to vector<8x64xf32>
    %111 = arith.addf %108, %110 : vector<8x64xf32>
    %cst_31 = arith.constant 5.000000e-01 : f32
    %112 = vector.broadcast %cst_31 : f32 to vector<8x64xf32>
    %113 = arith.mulf %112, %111 : vector<8x64xf32>
    %cst_32 = arith.constant 0.707106769 : f32
    %114 = vector.broadcast %cst_32 : f32 to vector<8x64xf32>
    %115 = arith.mulf %111, %114 : vector<8x64xf32>
    %cst_33 = arith.constant 0.000000e+00 : f32
    %116 = vector.broadcast %cst_33 : f32 to vector<8x64xf32>
    %117 = arith.cmpf oge, %115, %116 : vector<8x64xf32>
    %cst_34 = arith.constant 1.000000e+00 : f32
    %cst_35 = arith.constant -1.000000e+00 : f32
    %118 = vector.broadcast %cst_34 : f32 to vector<8x64xf32>
    %119 = vector.broadcast %cst_35 : f32 to vector<8x64xf32>
    %120 = arith.select %117, %118, %119 : vector<8x64xi1>, vector<8x64xf32>
    %121 = math.absf %115 : vector<8x64xf32>
    %cst_36 = arith.constant 0.327591091 : f32
    %122 = vector.broadcast %cst_36 : f32 to vector<8x64xf32>
    %123 = arith.mulf %122, %121 : vector<8x64xf32>
    %cst_37 = arith.constant 1.000000e+00 : f32
    %124 = vector.broadcast %cst_37 : f32 to vector<8x64xf32>
    %125 = arith.addf %124, %123 : vector<8x64xf32>
    %126 = tpu.reciprocal %125 {approx = true} : vector<8x64xf32> -> vector<8x64xf32>
    %cst_38 = arith.constant 1.06140542 : f32
    %127 = vector.broadcast %cst_38 : f32 to vector<8x64xf32>
    %128 = arith.mulf %126, %127 : vector<8x64xf32>
    %cst_39 = arith.constant -1.45315206 : f32
    %129 = vector.broadcast %cst_39 : f32 to vector<8x64xf32>
    %130 = arith.addf %129, %128 : vector<8x64xf32>
    %131 = arith.mulf %126, %130 : vector<8x64xf32>
    %cst_40 = arith.constant 1.42141378 : f32
    %132 = vector.broadcast %cst_40 : f32 to vector<8x64xf32>
    %133 = arith.addf %132, %131 : vector<8x64xf32>
    %134 = arith.mulf %126, %133 : vector<8x64xf32>
    %cst_41 = arith.constant -0.284496725 : f32
    %135 = vector.broadcast %cst_41 : f32 to vector<8x64xf32>
    %136 = arith.addf %135, %134 : vector<8x64xf32>
    %137 = arith.mulf %126, %136 : vector<8x64xf32>
    %cst_42 = arith.constant 0.254829586 : f32
    %138 = vector.broadcast %cst_42 : f32 to vector<8x64xf32>
    %139 = arith.addf %138, %137 : vector<8x64xf32>
    %140 = arith.mulf %126, %139 : vector<8x64xf32>
    %cst_43 = arith.constant 0.000000e+00 : f32
    %141 = vector.broadcast %cst_43 : f32 to vector<8x64xf32>
    %142 = arith.subf %141, %121 : vector<8x64xf32>
    %143 = arith.mulf %142, %121 : vector<8x64xf32>
    %144 = math.exp %143 : vector<8x64xf32>
    %145 = arith.mulf %140, %144 : vector<8x64xf32>
    %cst_44 = arith.constant 1.000000e+00 : f32
    %146 = vector.broadcast %cst_44 : f32 to vector<8x64xf32>
    %147 = arith.subf %146, %145 : vector<8x64xf32>
    %148 = arith.mulf %120, %147 : vector<8x64xf32>
    %cst_45 = arith.constant 1.000000e+00 : f32
    %149 = vector.broadcast %cst_45 : f32 to vector<8x64xf32>
    %150 = arith.addf %149, %148 : vector<8x64xf32>
    %151 = arith.mulf %113, %150 : vector<8x64xf32>
    %152 = arith.truncf %151 : vector<8x64xf32> to vector<8x64xbf16>
    %c0_46 = arith.constant 0 : index
    %c0_47 = arith.constant 0 : index
    %c0_48 = arith.constant 0 : index
    %153 = vector.load %arg6[%c0_46, %c0_47, %c0_48] : memref<1x64x32xbf16, #tpu.memory_space<vmem>>, vector<1x64x32xbf16>
    %154 = vector.shape_cast %153 : vector<1x64x32xbf16> to vector<64x32xbf16>
    %cst_49 = arith.constant dense<0.000000e+00> : vector<8x32xf32>
    %155 = tpu.matmul %152, %154, %cst_49 {dimension_numbers = #tpu.dot_dimension_numbers<[1], [0], [0], [1], [0, 0, 1, 1], [], []>} : vector<8x64xbf16>, vector<64x32xbf16>, vector<8x32xf32> -> vector<8x32xf32>
    %156 = vector.shape_cast %17 : vector<32xf32> to vector<1x32xf32>
    %157 = vector.broadcast %156 : vector<1x32xf32> to vector<8x32xf32>
    %158 = arith.addf %155, %157 : vector<8x32xf32>
    %159 = arith.addf %80, %158 : vector<8x32xf32>
    %c1_i32 = arith.constant 1 : i32
    %160 = arith.cmpi slt, %arg1, %c1_i32 : i32
    %161 = arith.extui %160 : i1 to i32
    %c0_i32_50 = arith.constant 0 : i32
    %162 = arith.cmpi ne, %161, %c0_i32_50 : i32
    scf.if %162 {
      %c0_53 = arith.constant 0 : index
      %c0_54 = arith.constant 0 : index
      %166 = vector.load %arg9[%c0_53, %c0_54] : memref<8x32xf32, #tpu.memory_space<vmem>>, vector<8x32xf32>
      tpu.vector_store %arg9[%c0_53, %c0_54], %159 {strides = array<i32>} : memref<8x32xf32, #tpu.memory_space<vmem>>, vector<8x32xf32>,
    } else {
    }
    %c1_i32_51 = arith.constant 1 : i32
    %163 = arith.cmpi eq, %arg1, %c1_i32_51 : i32
    %164 = arith.extui %163 : i1 to i32
    %c0_i32_52 = arith.constant 0 : i32
    %165 = arith.cmpi ne, %164, %c0_i32_52 : i32
    scf.if %165 {
      %c0_53 = arith.constant 0 : index
      %c0_54 = arith.constant 0 : index
      %166 = vector.load %arg8[%c0_53, %c0_54] : memref<8x32xf32, #tpu.memory_space<vmem>>, vector<8x32xf32>
      tpu.vector_store %arg8[%c0_53, %c0_54], %159 {strides = array<i32>} : memref<8x32xf32, #tpu.memory_space<vmem>>, vector<8x32xf32>,
    } else {
    }
    return
  }
  func.func @transform_0(%arg0: i32, %arg1: i32) -> (i32, i32) {
    %c0_i32 = arith.constant 0 : i32
    %c0_i32_0 = arith.constant 0 : i32
    return %arg0, %c0_i32 : i32, i32
  }
  func.func @transform_1(%arg0: i32, %arg1: i32) -> (i32, i32, i32) {
    %c0_i32 = arith.constant 0 : i32
    %c0_i32_0 = arith.constant 0 : i32
    %c0_i32_1 = arith.constant 0 : i32
    return %arg1, %c0_i32, %c0_i32_0 : i32, i32, i32
  }
  func.func @transform_2(%arg0: i32, %arg1: i32) -> (i32, i32, i32) {
    %c0_i32 = arith.constant 0 : i32
    %c0_i32_0 = arith.constant 0 : i32
    %c0_i32_1 = arith.constant 0 : i32
    return %arg1, %c0_i32, %c0_i32_0 : i32, i32, i32
  }
  func.func @transform_3(%arg0: i32, %arg1: i32) -> (i32, i32, i32) {
    %c0_i32 = arith.constant 0 : i32
    %c0_i32_0 = arith.constant 0 : i32
    %c0_i32_1 = arith.constant 0 : i32
    return %arg1, %c0_i32, %c0_i32_0 : i32, i32, i32
  }
  func.func @transform_4(%arg0: i32, %arg1: i32) -> (i32, i32, i32) {
    %c0_i32 = arith.constant 0 : i32
    %c0_i32_0 = arith.constant 0 : i32
    %c0_i32_1 = arith.constant 0 : i32
    return %arg1, %c0_i32, %c0_i32_0 : i32, i32, i32
  }
  func.func @transform_5(%arg0: i32, %arg1: i32) -> (i32, i32, i32) {
    %c0_i32 = arith.constant 0 : i32
    %c0_i32_0 = arith.constant 0 : i32
    %c0_i32_1 = arith.constant 0 : i32
    return %arg1, %c0_i32, %c0_i32_0 : i32, i32, i32
  }
  func.func @transform_6(%arg0: i32, %arg1: i32) -> (i32, i32) {
    %c0_i32 = arith.constant 0 : i32
    %c0_i32_0 = arith.constant 0 : i32
    return %arg0, %c0_i32 : i32, i32
  }
}

</mosaic_0001>

<llo_original>
// kernel: tpu_custom_call.1
$region0: #{tpu_custom_call.1}
  #allocation0 [shape = 'u32[]', space=smem, size = 0x4, offset = 0x4, fixed_abs, tag = 'smem constant byte address 0x4 - core index']
  #allocation1 [shape = 'u32[144,128]{1,0:T(1,128)}', space=vmem, size = 0x12000, scoped, tag = 'internal scratch']
  #allocation2 [shape = 'f32[8,32]{1,0:T(8,128)}', space=vmem, size = 0x1000, scoped, tag = 'scratch operand']
  %s0 = inlined_call_operand.hbm [shape: f32[8,32], index: 0, kind: input, shape index: {}]
  %s1 = inlined_call_operand.vmem [shape: bf16[2,32,96], index: 1, kind: input, shape index: {}]
  %s2 = inlined_call_operand.vmem [shape: bf16[2,32,32], index: 2, kind: input, shape index: {}]
  %s3 = inlined_call_operand.vmem [shape: bf16[2,32,64], index: 3, kind: input, shape index: {}]
  %s4 = inlined_call_operand.vmem [shape: bf16[2,64,32], index: 4, kind: input, shape index: {}]
  %s5 = inlined_call_operand.hbm [shape: f32[2,8,64], index: 5, kind: input, shape index: {}]
  %s6 = inlined_call_operand.hbm [shape: f32[8,32], index: 6, kind: output, shape index: {}]
  %s7 = sld [smem:[#allocation0]]
  $region77: #{tpu_custom_call.1} parent=0
    _
  %s9 = ssub.s32 1, %s7
  %s10 = scalar_select 0, %s9, %s7
  $region1: #{tpu_custom_call.1} parent=0
    #allocation3 [shape = 'u8[4096]{0}', space=vmem, size = 0x1000, scoped, tag = 'input window, operand 0, single buffered']
    #allocation4 [shape = 's32[2]{0}', space=sflag, size = 0x8, scoped, tag = 'scoped memory for tpu_custom_call.1']
    #allocation5 [shape = 's32[2]{0}', space=sflag, size = 0x8, scoped, tag = 'scoped memory for tpu_custom_call.1']
    #allocation6 [shape = 'u8[8192]{0}', space=vmem, size = 0x2000, scoped, tag = 'input window, operand 5']
    #allocation7 [shape = 's32[2]{0}', space=sflag, size = 0x8, scoped, tag = 'scoped memory for tpu_custom_call.1']
    #allocation8 [shape = 'u8[4096]{0}', space=vmem, size = 0x1000, scoped, tag = 'output window, operand 0, single buffered']
    %11 = vsyncpa [#allocation4], 0
    %12 = vsyncpa [#allocation7], 0
    %s13 = scalar_lea.sflag [#allocation7], 1
    %14 = vsyncpa %s13, 0
    %15 = vsyncpa [#allocation5], 0
    loop: start=0, step=1, limit=4
    $region2: #{tpu_custom_call.1} parent=1 // loop_pre_header
      _
    $region3: #{tpu_custom_call.1} parent=1 // loop_header
      %s17 = sphi 0, %s21
      %p18 = scmp.ge.s32.totalorder %s17, 4
      %s24 = sphi 0, %s36
      %s25 = sphi 0, %s32
      %s26 = sphi 0, %s24
      %s27 = sphi 0, %s25
      %s28 = sphi 0, %s26
      %s29 = sphi 0, %s27
      %s39 = sphi 0, %s41
      %s42 = sphi 0, %s39
      %s43 = sphi 0, %s42
      %s59 = sphi 0, %s43
      %s65 = sphi 0, %s67
      %s68 = sphi 0, %s65
      %s69 = sphi 0, %s68
      %s85 = sphi 0, %s69
      %s91 = sphi 0, %s93
      %s94 = sphi 0, %s91
      %s95 = sphi 0, %s94
      %s111 = sphi 0, %s95
      %s117 = sphi 0, %s119
      %s120 = sphi 0, %s117
      %s121 = sphi 0, %s120
      %s137 = sphi 0, %s121
      %s143 = sphi 0, %s145
      %s146 = sphi 0, %s143
      %s147 = sphi 0, %s146
      %s163 = sphi 0, %s147
      %s169 = sphi 0, %s171
      %s172 = sphi 0, %s169
      %s173 = sphi 0, %s172
      %s189 = sphi 0, %s173
      %s195 = sphi 0, %s197
      %s198 = sphi 0, %s195
      %s199 = sphi 0, %s198
      %s215 = sphi 0, %s199
    $region4: #{tpu_custom_call.1} parent=1 // loop_header_branch
      %20 = sbr.rel (%p18) target = $region8
    $region5: #{tpu_custom_call.1} parent=1 // loop_body
      %s22 = ssub.s32 %s17, 1
      %s23 = ssub.s32 %s17, 2
      %s30 = sadd.s32 1, %s25
      %p31 = scmp.ge.s32.totalorder %s30, 2
      %s32 = scalar_select %p31, 0, %s30
      %s33 = sadd.s32 1, %s24
      %s34 = scalar_select %p31, %s33, %s24
      %p35 = scmp.ge.s32.totalorder %s34, 1
      %s36 = scalar_select %p35, 0, %s34
      %s37 = ssub.s32 %s24, %s36
      %p38 = scmp.eq.s32.totalorder %s37, 0
      %s40 = sadd.s32 %s39, 1
      %s41 = scalar_select %p38, %s39, %s40
      %p44 = pneg %p38
      %p45 = scmp.eq.s32.totalorder %s17, 1
      %p46 = por %p44, %p45
      %p47 = scmp.ne.s32.totalorder %s39, %s42
      %p48 = scmp.eq.s32.totalorder %s17, 0
      %p49 = por %p47, %p48
      %p50 = scmp.ne.s32.totalorder %s39, %s42
      %p51 = scmp.eq.s32.totalorder %s22, 1
      %p52 = por %p50, %p51
      %p53 = scmp.ne.s32.totalorder %s42, %s43
      %p54 = scmp.eq.s32.totalorder %s22, 0
      %p55 = por %p53, %p54
      %p56 = scmp.ne.s32.totalorder %s42, %s43
      %p57 = scmp.eq.s32.totalorder %s23, 1
      %p58 = por %p56, %p57
      %p60 = scmp.ne.s32.totalorder %s43, %s59
      %p61 = scmp.eq.s32.totalorder %s23, 0
      %p62 = por %p60, %p61
      %s63 = ssub.s32 %s25, %s32
      %p64 = scmp.eq.s32.totalorder %s63, 0
      %s66 = sadd.s32 %s65, 1
      %s67 = scalar_select %p64, %s65, %s66
      %p70 = pneg %p64
      %p71 = scmp.eq.s32.totalorder %s17, 1
      %p72 = por %p70, %p71
      %p73 = scmp.ne.s32.totalorder %s65, %s68
      %p74 = scmp.eq.s32.totalorder %s17, 0
      %p75 = por %p73, %p74
      %p76 = scmp.ne.s32.totalorder %s65, %s68
      %p77 = scmp.eq.s32.totalorder %s22, 1
      %p78 = por %p76, %p77
      %p79 = scmp.ne.s32.totalorder %s68, %s69
      %p80 = scmp.eq.s32.totalorder %s22, 0
      %p81 = por %p79, %p80
      %p82 = scmp.ne.s32.totalorder %s68, %s69
      %p83 = scmp.eq.s32.totalorder %s23, 1
      %p84 = por %p82, %p83
      %p86 = scmp.ne.s32.totalorder %s69, %s85
      %p87 = scmp.eq.s32.totalorder %s23, 0
      %p88 = por %p86, %p87
      %s89 = ssub.s32 %s25, %s32
      %p90 = scmp.eq.s32.totalorder %s89, 0
      %s92 = sadd.s32 %s91, 1
      %s93 = scalar_select %p90, %s91, %s92
      %p96 = pneg %p90
      %p97 = scmp.eq.s32.totalorder %s17, 1
      %p98 = por %p96, %p97
      %p99 = scmp.ne.s32.totalorder %s91, %s94
      %p100 = scmp.eq.s32.totalorder %s17, 0
      %p101 = por %p99, %p100
      %p102 = scmp.ne.s32.totalorder %s91, %s94
      %p103 = scmp.eq.s32.totalorder %s22, 1
      %p104 = por %p102, %p103
      %p105 = scmp.ne.s32.totalorder %s94, %s95
      %p106 = scmp.eq.s32.totalorder %s22, 0
      %p107 = por %p105, %p106
      %p108 = scmp.ne.s32.totalorder %s94, %s95
      %p109 = scmp.eq.s32.totalorder %s23, 1
      %p110 = por %p108, %p109
      %p112 = scmp.ne.s32.totalorder %s95, %s111
      %p113 = scmp.eq.s32.totalorder %s23, 0
      %p114 = por %p112, %p113
      %s115 = ssub.s32 %s25, %s32
      %p116 = scmp.eq.s32.totalorder %s115, 0
      %s118 = sadd.s32 %s117, 1
      %s119 = scalar_select %p116, %s117, %s118
      %p122 = pneg %p116
      %p123 = scmp.eq.s32.totalorder %s17, 1
      %p124 = por %p122, %p123
      %p125 = scmp.ne.s32.totalorder %s117, %s120
      %p126 = scmp.eq.s32.totalorder %s17, 0
      %p127 = por %p125, %p126
      %p128 = scmp.ne.s32.totalorder %s117, %s120
      %p129 = scmp.eq.s32.totalorder %s22, 1
      %p130 = por %p128, %p129
      %p131 = scmp.ne.s32.totalorder %s120, %s121
      %p132 = scmp.eq.s32.totalorder %s22, 0
      %p133 = por %p131, %p132
      %p134 = scmp.ne.s32.totalorder %s120, %s121
      %p135 = scmp.eq.s32.totalorder %s23, 1
      %p136 = por %p134, %p135
      %p138 = scmp.ne.s32.totalorder %s121, %s137
      %p139 = scmp.eq.s32.totalorder %s23, 0
      %p140 = por %p138, %p139
      %s141 = ssub.s32 %s25, %s32
      %p142 = scmp.eq.s32.totalorder %s141, 0
      %s144 = sadd.s32 %s143, 1
      %s145 = scalar_select %p142, %s143, %s144
      %p148 = pneg %p142
      %p149 = scmp.eq.s32.totalorder %s17, 1
      %p150 = por %p148, %p149
      %p151 = scmp.ne.s32.totalorder %s143, %s146
      %p152 = scmp.eq.s32.totalorder %s17, 0
      %p153 = por %p151, %p152
      %p154 = scmp.ne.s32.totalorder %s143, %s146
      %p155 = scmp.eq.s32.totalorder %s22, 1
      %p156 = por %p154, %p155
      %p157 = scmp.ne.s32.totalorder %s146, %s147
      %p158 = scmp.eq.s32.totalorder %s22, 0
      %p159 = por %p157, %p158
      %p160 = scmp.ne.s32.totalorder %s146, %s147
      %p161 = scmp.eq.s32.totalorder %s23, 1
      %p162 = por %p160, %p161
      %p164 = scmp.ne.s32.totalorder %s147, %s163
      %p165 = scmp.eq.s32.totalorder %s23, 0
      %p166 = por %p164, %p165
      %s167 = ssub.s32 %s25, %s32
      %p168 = scmp.eq.s32.totalorder %s167, 0
      %s170 = sadd.s32 %s169, 1
      %s171 = scalar_select %p168, %s169, %s170
      %p174 = pneg %p168
      %p175 = scmp.eq.s32.totalorder %s17, 1
      %p176 = por %p174, %p175
      %p177 = scmp.ne.s32.totalorder %s169, %s172
      %p178 = scmp.eq.s32.totalorder %s17, 0
      %p179 = por %p177, %p178
      %p180 = scmp.ne.s32.totalorder %s169, %s172
      %p181 = scmp.eq.s32.totalorder %s22, 1
      %p182 = por %p180, %p181
      %p183 = scmp.ne.s32.totalorder %s172, %s173
      %p184 = scmp.eq.s32.totalorder %s22, 0
      %p185 = por %p183, %p184
      %p186 = scmp.ne.s32.totalorder %s172, %s173
      %p187 = scmp.eq.s32.totalorder %s23, 1
      %p188 = por %p186, %p187
      %p190 = scmp.ne.s32.totalorder %s173, %s189
      %p191 = scmp.eq.s32.totalorder %s23, 0
      %p192 = por %p190, %p191
      %s193 = ssub.s32 %s24, %s36
      %p194 = scmp.eq.s32.totalorder %s193, 0
      %s196 = sadd.s32 %s195, 1
      %s197 = scalar_select %p194, %s195, %s196
      %p200 = pneg %p194
      %p201 = scmp.eq.s32.totalorder %s17, 1
      %p202 = por %p200, %p201
      %p203 = scmp.ne.s32.totalorder %s195, %s198
      %p204 = scmp.eq.s32.totalorder %s17, 0
      %p205 = por %p203, %p204
      %p206 = scmp.ne.s32.totalorder %s195, %s198
      %p207 = scmp.eq.s32.totalorder %s22, 1
      %p208 = por %p206, %p207
      %p209 = scmp.ne.s32.totalorder %s198, %s199
      %p210 = scmp.eq.s32.totalorder %s22, 0
      %p211 = por %p209, %p210
      %p212 = scmp.ne.s32.totalorder %s198, %s199
      %p213 = scmp.eq.s32.totalorder %s23, 1
      %p214 = por %p212, %p213
      %p216 = scmp.ne.s32.totalorder %s199, %s215
      %p217 = scmp.eq.s32.totalorder %s23, 0
      %p218 = por %p216, %p217
      %p219 = scmp.le.s32.totalorder 1, %s17
      %p220 = scmp.lt.s32.totalorder %s17, 3
      %p221 = pnand %p219, %p220
      %p222 = pneg %p221
      // Predicated region
      $region9: #{tpu_custom_call.1} parent=5 // pred_check
        _
      $region10: #{tpu_custom_call.1} parent=5 // pred_check_branch
        %224 = sbr.rel (%p221) target = $region12
      $region11: #{tpu_custom_call.1} parent=5 // pred_region
        %s225 = ssub.s32 %s17, 1
        // Predicated region
        $region13: #{tpu_custom_call.1} parent=11 // pred_check
          %p226 = pneg %p55
        $region14: #{tpu_custom_call.1} parent=11 // pred_check_branch
          %228 = sbr.rel (%p226) target = $region16
        $region15: #{tpu_custom_call.1} parent=11 // pred_region
          %s230 = ssub.s32 128, 128
          %231 = vsyncadd [#allocation4], %s230
          %s232 = smul.addr %s26, 128
          %s233 = scalar_lea.hbm %s0, %s232
          %s235 = sshll.u32 [#allocation3], 4
          %s236 = int_to_ptr.vmem [resolvable:$true] %s235
          %238 = dma.hbm_to_vmem [thread:$0]  %s233, 128, %s236, [#allocation4]
        $region16: #{tpu_custom_call.1} parent=11 // pred_fallthru
          _
      $region12: #{tpu_custom_call.1} parent=5 // pred_fallthru
        _
      %p239 = scmp.lt.s32.totalorder %s17, 2
      // Predicated region
      $region17: #{tpu_custom_call.1} parent=5 // pred_check
        %p240 = pneg %p239
      $region18: #{tpu_custom_call.1} parent=5 // pred_check_branch
        %242 = sbr.rel (%p240) target = $region20
      $region19: #{tpu_custom_call.1} parent=5 // pred_region
        // Predicated region
        $region21: #{tpu_custom_call.1} parent=19 // pred_check
          %p243 = pneg %p75
        $region22: #{tpu_custom_call.1} parent=19 // pred_check_branch
          %245 = sbr.rel (%p243) target = $region24
        $region23: #{tpu_custom_call.1} parent=19 // pred_region
          %p246 = scmp.lt.s32.totalorder %s25, 1
          %s247 = scalar_select %p246, %s25, 1
          %s248 = smul.addr %s247, 4
          %s249 = smul.addr %s248, 4
          %s250 = scalar_lea.vmem %s1, %s249
        $region24: #{tpu_custom_call.1} parent=19 // pred_fallthru
          _
        // Predicated region
        $region25: #{tpu_custom_call.1} parent=19 // pred_check
          %p251 = pneg %p101
        $region26: #{tpu_custom_call.1} parent=19 // pred_check_branch
          %253 = sbr.rel (%p251) target = $region28
        $region27: #{tpu_custom_call.1} parent=19 // pred_region
          %p254 = scmp.lt.s32.totalorder %s25, 1
          %s255 = scalar_select %p254, %s25, 1
          %s256 = smul.addr %s255, 4
          %s257 = smul.addr %s256, 4
          %s258 = scalar_lea.vmem %s2, %s257
        $region28: #{tpu_custom_call.1} parent=19 // pred_fallthru
          _
        // Predicated region
        $region29: #{tpu_custom_call.1} parent=19 // pred_check
          %p259 = pneg %p127
        $region30: #{tpu_custom_call.1} parent=19 // pred_check_branch
          %261 = sbr.rel (%p259) target = $region32
        $region31: #{tpu_custom_call.1} parent=19 // pred_region
          %p262 = scmp.lt.s32.totalorder %s25, 1
          %s263 = scalar_select %p262, %s25, 1
          %s264 = smul.addr %s263, 4
          %s265 = smul.addr %s264, 4
          %s266 = scalar_lea.vmem %s3, %s265
        $region32: #{tpu_custom_call.1} parent=19 // pred_fallthru
          _
        // Predicated region
        $region33: #{tpu_custom_call.1} parent=19 // pred_check
          %p267 = pneg %p153
        $region34: #{tpu_custom_call.1} parent=19 // pred_check_branch
          %269 = sbr.rel (%p267) target = $region36
        $region35: #{tpu_custom_call.1} parent=19 // pred_region
          %p270 = scmp.lt.s32.totalorder %s25, 1
          %s271 = scalar_select %p270, %s25, 1
          %s272 = smul.addr %s271, 8
          %s273 = smul.addr %s272, 4
          %s274 = scalar_lea.vmem %s4, %s273
        $region36: #{tpu_custom_call.1} parent=19 // pred_fallthru
          _
        // Predicated region
        $region37: #{tpu_custom_call.1} parent=19 // pred_check
          %p275 = pneg %p179
        $region38: #{tpu_custom_call.1} parent=19 // pred_check_branch
          %277 = sbr.rel (%p275) target = $region40
        $region39: #{tpu_custom_call.1} parent=19 // pred_region
          %s278 = sand.u32 %s169, 1
          %s279 = scalar_lea.sflag [#allocation7], %s278
          %s280 = sand.u32 %s169, 1
          %s281 = smul.addr %s280, 8
          %s282 = scalar_lea.vmem [#allocation6], %s281
          %s284 = ssub.s32 128, 128
          %285 = vsyncadd %s279, %s284
          %s286 = smul.addr %s25, 128
          %s287 = scalar_lea.hbm %s5, %s286
          %s289 = sshll.u32 %s282, 4
          %s290 = int_to_ptr.vmem [resolvable:$true] %s289
          %292 = dma.hbm_to_vmem [thread:$0]  %s287, 128, %s290, %s279
        $region40: #{tpu_custom_call.1} parent=19 // pred_fallthru
          _
      $region20: #{tpu_custom_call.1} parent=5 // pred_fallthru
        _
      %p293 = scmp.le.s32.totalorder 1, %s17
      %p294 = scmp.lt.s32.totalorder %s17, 3
      %p295 = pnand %p293, %p294
      %p296 = pneg %p295
      // Predicated region
      $region41: #{tpu_custom_call.1} parent=5 // pred_check
        _
      $region42: #{tpu_custom_call.1} parent=5 // pred_check_branch
        %298 = sbr.rel (%p295) target = $region44
      $region43: #{tpu_custom_call.1} parent=5 // pred_region
        %s299 = ssub.s32 %s17, 1
        // Predicated region
        $region45: #{tpu_custom_call.1} parent=43 // pred_check
          %p300 = pneg %p55
        $region46: #{tpu_custom_call.1} parent=43 // pred_check_branch
          %302 = sbr.rel (%p300) target = $region48
        $region47: #{tpu_custom_call.1} parent=43 // pred_region
          %303 = dma.done [#allocation4], 128
        $region48: #{tpu_custom_call.1} parent=43 // pred_fallthru
          _
        %s304 = sand.u32 %s172, 1
        %s305 = scalar_lea.sflag [#allocation7], %s304
        %s306 = sand.u32 %s172, 1
        %s307 = smul.addr %s306, 8
        %s308 = scalar_lea.vmem [#allocation6], %s307
        // Predicated region
        $region49: #{tpu_custom_call.1} parent=43 // pred_check
          %p309 = pneg %p185
        $region50: #{tpu_custom_call.1} parent=43 // pred_check_branch
          %311 = sbr.rel (%p309) target = $region52
        $region51: #{tpu_custom_call.1} parent=43 // pred_region
          %312 = dma.done %s305, 128
        $region52: #{tpu_custom_call.1} parent=43 // pred_fallthru
          _
        %p313 = pneg %p55
        %p314 = pneg %p52
        %p315 = scmp.lt.s32.totalorder %s27, 1
        %s316 = scalar_select %p315, %s27, 1
        %s317 = smul.addr %s316, 4
        %s318 = smul.addr %s317, 4
        %s319 = scalar_lea.vmem %s1, %s318
        %p320 = pneg %p81
        %p321 = pneg %p78
        %p322 = scmp.lt.s32.totalorder %s27, 1
        %s323 = scalar_select %p322, %s27, 1
        %s324 = smul.addr %s323, 4
        %s325 = smul.addr %s324, 4
        %s326 = scalar_lea.vmem %s2, %s325
        %p327 = pneg %p107
        %p328 = pneg %p104
        %p329 = scmp.lt.s32.totalorder %s27, 1
        %s330 = scalar_select %p329, %s27, 1
        %s331 = smul.addr %s330, 4
        %s332 = smul.addr %s331, 4
        %s333 = scalar_lea.vmem %s3, %s332
        %p334 = pneg %p133
        %p335 = pneg %p130
        %p336 = scmp.lt.s32.totalorder %s27, 1
        %s337 = scalar_select %p336, %s27, 1
        %s338 = smul.addr %s337, 8
        %s339 = smul.addr %s338, 4
        %s340 = scalar_lea.vmem %s4, %s339
        %p341 = pneg %p159
        %p342 = pneg %p156
        %s343 = sand.u32 %s172, 1
        %s344 = scalar_lea.sflag [#allocation7], %s343
        %s345 = sand.u32 %s172, 1
        %s346 = smul.addr %s345, 8
        %s347 = scalar_lea.vmem [#allocation6], %s346
        %p348 = pneg %p185
        %p349 = pneg %p182
        %p350 = pneg %p211
        %p351 = pneg %p208
        %p352 = scmp.lt.s32.totalorder %s27, 1
        %s353 = scalar_select %p352, %s27, 1
        %s354 = smul.addr %s353, 4
        %s355 = smul.addr %s354, 4
        %s356 = scalar_lea.vmem %s1, %s355
        %p357 = scmp.lt.s32.totalorder %s27, 1
        %s358 = scalar_select %p357, %s27, 1
        %s359 = smul.addr %s358, 4
        %s360 = smul.addr %s359, 4
        %s361 = scalar_lea.vmem %s2, %s360
        %p362 = scmp.lt.s32.totalorder %s27, 1
        %s363 = scalar_select %p362, %s27, 1
        %s364 = smul.addr %s363, 4
        %s365 = smul.addr %s364, 4
        %s366 = scalar_lea.vmem %s3, %s365
        %p367 = scmp.lt.s32.totalorder %s27, 1
        %s368 = scalar_select %p367, %s27, 1
        %s369 = smul.addr %s368, 8
        %s370 = smul.addr %s369, 4
        %s371 = scalar_lea.vmem %s4, %s370
        %p373 = scmp.eq.s32.totalorder %s27, 0
        // Predicated region
        $region53: #{tpu_custom_call.1} parent=43 // pred_check
          %p374 = pneg %p373
        $region54: #{tpu_custom_call.1} parent=43 // pred_check_branch
          %376 = sbr.rel (%p374) target = $region56
        $region55: #{tpu_custom_call.1} parent=43 // pred_region
          %v377 = vld [vmem:[#allocation3] sm:$0xff]
          %vm378 = vcmask 261120
          %379 = vst.msk [vmem:[#allocation2] sm:$0xff] %vm378, %v377
        $region56: #{tpu_custom_call.1} parent=43 // pred_fallthru
          _
        %v380 = vld [vmem:[#allocation2] sm:$0xff]
        %v381 = vld [vmem:[%s308] sm:$0xff]
        %vm382 = vcmask 261120
        %v383 = vsel %vm382, %v380, 0.0
        %384 = vadd.xlane.f32.xlu0 %v383
        %v385 = vpop.xlane.xlu0 %384
        %v386 = vrcp.pop 32.0
        %v387 = vmul.f32 %v385, %v386
        %v388 = vsub.f32 %v380, %v387
        %v389 = vmul.f32 %v388, %v388
        %v390 = vsel %vm382, %v389, 0.0
        %391 = vadd.xlane.f32.xlu0 %v390
        %v392 = vpop.xlane.xlu0 %391
        %v393 = vmul.f32 %v392, %v386
        %v394 = vadd.f32 %v393, 1e-05
        %v395 = vrsqrt.pop %v394
        %v396 = vmul.f32 %v388, %v395
        %v397 = vlaneseq
        %v398 = vshrl.u32 %v397, 7
        %v399 = vsub.s32 0, %v398
        %v400 = vrot.slane %v381, %v399
        %v401 = vmul.f32 %v396, %v400
        %v402 = vlaneseq
        %v403 = vshrl.u32 %v402, 7
        %v404 = vsub.s32 1, %v403
        %v405 = vrot.slane %v381, %v404
        %v406 = vadd.f32 %v401, %v405
        %v407 = vpack.c.bf16 %v406, %v406
        %v408 = vld [vmem:[%s356] sm:$0xf]
        %v409 = vld [vmem:[%s356 + $0x4] sm:$0xf]
        %v410 = vld [vmem:[%s356 + $0x8] sm:$0xf]
        %v411 = vld [vmem:[%s356 + $0xc] sm:$0xf]
        %v416 = vunpack.c.l.b16 %v408
        %v417 = vunpack.c.l.b16 %v409
        %v418 = vunpack.c.l.b16 %v410
        %v419 = vunpack.c.l.b16 %v411
        %v420 = vpack.c.b16 %v417, %v416
        %v421 = vpack.c.b16 %v419, %v418
        %v425 = vsel %vm382, %v407, 0
        %427 = vmatprep.subr.bf16.mxu0 0
        %428 = vmatpush1.bf16.msra.mxu0 0
        %429 = vmatprep.subr.bf16.mxu0 0
        %430 = vmatpush1.bf16.msra.mxu0 0
        %431 = vmatprep.subr.bf16.mxu0 0
        %432 = vmatpush1.bf16.msra.mxu0 0
        %433 = vmatprep.subr.bf16.mxu0 0
        %434 = vmatpush1.bf16.msra.mxu0 0
        %435 = vmatprep.subr.bf16.mxu0 0
        %436 = vmatpush1.bf16.msra.mxu0 0
        %437 = vmatprep.subr.bf16.mxu0 0
        %438 = vmatpush1.bf16.msra.mxu0 0
        %439 = vmatprep.subr.bf16.mxu0 0
        %440 = vmatpush1.bf16.msra.mxu0 %v421
        %441 = vmatprep.subr.bf16.mxu0 0
        %442 = vmatpush1.bf16.msra.mxu0 %v420
        %443 = vmatprep.subr.bf16.mxu0 0
        %444 = vmatpush2.bf16.msra.mxu0 0
        %445 = vmatprep.subr.bf16.mxu0 0
        %446 = vmatpush2.bf16.msra.mxu0 0
        %447 = vmatprep.subr.bf16.mxu0 0
        %448 = vmatpush2.bf16.msra.mxu0 0
        %449 = vmatprep.subr.bf16.mxu0 0
        %450 = vmatpush2.bf16.msra.mxu0 0
        %451 = vmatprep.subr.bf16.mxu0 0
        %452 = vmatpush2.bf16.msra.mxu0 0
        %453 = vmatprep.subr.bf16.mxu0 0
        %454 = vmatpush2.bf16.msra.mxu0 0
        %455 = vmatprep.subr.bf16.mxu0 0
        %456 = vmatpush2.bf16.msra.mxu0 0
        %457 = vmatprep.subr.bf16.mxu0 0
        %458 = vmatpush2.bf16.msra.mxu0 0
        %459 = vmatprep.mubr.bf16.mxu0 0
        %460 = vmatmul.mubr.bf16.gmra.mxu0 %v425
        %v461 = vpop.f32.mrf.mxu0
        %v462 = vadd.f32 0.0, %v461
        %v463 = vpop.f32.mrf.mxu0
        %v464 = vpop.f32.mrf.mxu0
        %v465 = vpop.f32.mrf.mxu0
        %466 = vdwg.mxu0
        %468 = vrot.lane.b32.xlu0 %v462, 112
        %v469 = vpop.permute.xlu0 %468
        %v471 = vcombine.high %v462, 0.0
        %v473 = vunpack.c.l.s4 1983009808
        %v474 = vunpack.c.0.s8 %v473
        %v475 = vlaneseq
        %v476 = vshrl.u32 %v475, 7
        %v477 = vsub.s32 %v474, %v476
        %v478 = vrot.slane %v462, %v477
        %v480 = vunpack.c.l.s4 1983009808
        %v481 = vunpack.c.0.s8 %v480
        %v482 = vlaneseq
        %v483 = vshrl.u32 %v482, 7
        %v484 = vsub.s32 %v481, %v483
        %v485 = vrot.slane %v471, %v484
        %v486 = vcombine.high %v469, 0.0
        %v488 = vunpack.c.l.s4 1983009808
        %v489 = vunpack.c.0.s8 %v488
        %v490 = vlaneseq
        %v491 = vshrl.u32 %v490, 7
        %v492 = vsub.s32 %v489, %v491
        %v493 = vrot.slane %v469, %v492
        %v495 = vunpack.c.l.s4 1983009808
        %v496 = vunpack.c.0.s8 %v495
        %v497 = vlaneseq
        %v498 = vshrl.u32 %v497, 7
        %v499 = vsub.s32 %v496, %v498
        %v500 = vrot.slane %v486, %v499
        %v501 = vcombine.low %v478, %v493
        %v502 = vcombine.high %v478, %v493
        %v504 = vunpack.c.l.s4 1934713408
        %v505 = vunpack.c.0.s8 %v504
        %v506 = vlaneseq
        %v507 = vshrl.u32 %v506, 7
        %v508 = vsub.s32 %v505, %v507
        %v509 = vrot.slane %v501, %v508
        %v511 = vunpack.c.l.s4 1934713408
        %v512 = vunpack.c.0.s8 %v511
        %v513 = vlaneseq
        %v514 = vshrl.u32 %v513, 7
        %v515 = vsub.s32 %v512, %v514
        %v516 = vrot.slane %v502, %v515
        %v517 = vcombine.low %v485, %v500
        %v518 = vcombine.high %v485, %v500
        %v520 = vunpack.c.l.s4 1934713408
        %v521 = vunpack.c.0.s8 %v520
        %v522 = vlaneseq
        %v523 = vshrl.u32 %v522, 7
        %v524 = vsub.s32 %v521, %v523
        %v525 = vrot.slane %v517, %v524
        %v527 = vunpack.c.l.s4 1934713408
        %v528 = vunpack.c.0.s8 %v527
        %v529 = vlaneseq
        %v530 = vshrl.u32 %v529, 7
        %v531 = vsub.s32 %v528, %v530
        %v532 = vrot.slane %v518, %v531
        %v533 = vcombine.high %v509, 0.0
        %v534 = vcombine.high %v516, 0.0
        %v535 = vcombine.high %v525, 0.0
        %v536 = vcombine.high %v532, 0.0
        %v537 = vpack.c.bf16 %v509, %v509
        %v538 = vpack.c.bf16 %v533, %v533
        %v539 = vpack.c.bf16 %v516, %v516
        %v540 = vpack.c.bf16 %v534, %v534
        %v541 = vpack.c.bf16 %v525, %v525
        %v542 = vpack.c.bf16 %v535, %v535
        %v543 = vpack.c.bf16 %v532, %v532
        %v544 = vpack.c.bf16 %v536, %v536
        %545 = vrot.lane.b32.xlu0 %v462, 96
        %v546 = vpop.permute.xlu0 %545
        %547 = vrot.lane.b32.xlu0 %v469, 96
        %v548 = vpop.permute.xlu0 %547
        %v551 = vcombine.high %v546, 0.0
        %v553 = vunpack.c.l.s4 1983009808
        %v554 = vunpack.c.0.s8 %v553
        %v555 = vlaneseq
        %v556 = vshrl.u32 %v555, 7
        %v557 = vsub.s32 %v554, %v556
        %v558 = vrot.slane %v546, %v557
        %v560 = vunpack.c.l.s4 1983009808
        %v561 = vunpack.c.0.s8 %v560
        %v562 = vlaneseq
        %v563 = vshrl.u32 %v562, 7
        %v564 = vsub.s32 %v561, %v563
        %v565 = vrot.slane %v551, %v564
        %v566 = vcombine.high %v548, 0.0
        %v568 = vunpack.c.l.s4 1983009808
        %v569 = vunpack.c.0.s8 %v568
        %v570 = vlaneseq
        %v571 = vshrl.u32 %v570, 7
        %v572 = vsub.s32 %v569, %v571
        %v573 = vrot.slane %v548, %v572
        %v575 = vunpack.c.l.s4 1983009808
        %v576 = vunpack.c.0.s8 %v575
        %v577 = vlaneseq
        %v578 = vshrl.u32 %v577, 7
        %v579 = vsub.s32 %v576, %v578
        %v580 = vrot.slane %v566, %v579
        %v581 = vcombine.low %v558, %v573
        %v582 = vcombine.high %v558, %v573
        %v584 = vunpack.c.l.s4 1934713408
        %v585 = vunpack.c.0.s8 %v584
        %v586 = vlaneseq
        %v587 = vshrl.u32 %v586, 7
        %v588 = vsub.s32 %v585, %v587
        %v589 = vrot.slane %v581, %v588
        %v591 = vunpack.c.l.s4 1934713408
        %v592 = vunpack.c.0.s8 %v591
        %v593 = vlaneseq
        %v594 = vshrl.u32 %v593, 7
        %v595 = vsub.s32 %v592, %v594
        %v596 = vrot.slane %v582, %v595
        %v597 = vcombine.low %v565, %v580
        %v598 = vcombine.high %v565, %v580
        %v600 = vunpack.c.l.s4 1934713408
        %v601 = vunpack.c.0.s8 %v600
        %v602 = vlaneseq
        %v603 = vshrl.u32 %v602, 7
        %v604 = vsub.s32 %v601, %v603
        %v605 = vrot.slane %v597, %v604
        %v607 = vunpack.c.l.s4 1934713408
        %v608 = vunpack.c.0.s8 %v607
        %v609 = vlaneseq
        %v610 = vshrl.u32 %v609, 7
        %v611 = vsub.s32 %v608, %v610
        %v612 = vrot.slane %v598, %v611
        %v613 = vcombine.high %v589, 0.0
        %v614 = vcombine.high %v596, 0.0
        %v615 = vcombine.high %v605, 0.0
        %v616 = vcombine.high %v612, 0.0
        %v617 = vpack.c.bf16 %v589, %v589
        %v618 = vpack.c.bf16 %v613, %v613
        %v619 = vpack.c.bf16 %v596, %v596
        %v620 = vpack.c.bf16 %v614, %v614
        %v621 = vpack.c.bf16 %v605, %v605
        %v622 = vpack.c.bf16 %v615, %v615
        %v623 = vpack.c.bf16 %v612, %v612
        %v624 = vpack.c.bf16 %v616, %v616
        %625 = vrot.lane.b32.xlu0 %v462, 64
        %v626 = vpop.permute.xlu0 %625
        %627 = vrot.lane.b32.xlu0 %v469, 64
        %v628 = vpop.permute.xlu0 %627
        %v631 = vcombine.high %v626, 0.0
        %v633 = vunpack.c.l.s4 1983009808
        %v634 = vunpack.c.0.s8 %v633
        %v635 = vlaneseq
        %v636 = vshrl.u32 %v635, 7
        %v637 = vsub.s32 %v634, %v636
        %v638 = vrot.slane %v626, %v637
        %v640 = vunpack.c.l.s4 1983009808
        %v641 = vunpack.c.0.s8 %v640
        %v642 = vlaneseq
        %v643 = vshrl.u32 %v642, 7
        %v644 = vsub.s32 %v641, %v643
        %v645 = vrot.slane %v631, %v644
        %v646 = vcombine.high %v628, 0.0
        %v648 = vunpack.c.l.s4 1983009808
        %v649 = vunpack.c.0.s8 %v648
        %v650 = vlaneseq
        %v651 = vshrl.u32 %v650, 7
        %v652 = vsub.s32 %v649, %v651
        %v653 = vrot.slane %v628, %v652
        %v655 = vunpack.c.l.s4 1983009808
        %v656 = vunpack.c.0.s8 %v655
        %v657 = vlaneseq
        %v658 = vshrl.u32 %v657, 7
        %v659 = vsub.s32 %v656, %v658
        %v660 = vrot.slane %v646, %v659
        %v661 = vcombine.low %v638, %v653
        %v662 = vcombine.high %v638, %v653
        %v664 = vunpack.c.l.s4 1934713408
        %v665 = vunpack.c.0.s8 %v664
        %v666 = vlaneseq
        %v667 = vshrl.u32 %v666, 7
        %v668 = vsub.s32 %v665, %v667
        %v669 = vrot.slane %v661, %v668
        %v671 = vunpack.c.l.s4 1934713408
        %v672 = vunpack.c.0.s8 %v671
        %v673 = vlaneseq
        %v674 = vshrl.u32 %v673, 7
        %v675 = vsub.s32 %v672, %v674
        %v676 = vrot.slane %v662, %v675
        %v677 = vcombine.low %v645, %v660
        %v678 = vcombine.high %v645, %v660
        %v680 = vunpack.c.l.s4 1934713408
        %v681 = vunpack.c.0.s8 %v680
        %v682 = vlaneseq
        %v683 = vshrl.u32 %v682, 7
        %v684 = vsub.s32 %v681, %v683
        %v685 = vrot.slane %v677, %v684
        %v687 = vunpack.c.l.s4 1934713408
        %v688 = vunpack.c.0.s8 %v687
        %v689 = vlaneseq
        %v690 = vshrl.u32 %v689, 7
        %v691 = vsub.s32 %v688, %v690
        %v692 = vrot.slane %v678, %v691
        %v693 = vcombine.high %v669, 0.0
        %v694 = vcombine.high %v676, 0.0
        %v695 = vcombine.high %v685, 0.0
        %v696 = vcombine.high %v692, 0.0
        %v697 = vpack.c.bf16 %v669, %v669
        %v698 = vpack.c.bf16 %v693, %v693
        %v699 = vpack.c.bf16 %v676, %v676
        %v700 = vpack.c.bf16 %v694, %v694
        %v701 = vpack.c.bf16 %v685, %v685
        %v702 = vpack.c.bf16 %v695, %v695
        %v703 = vpack.c.bf16 %v692, %v692
        %v704 = vpack.c.bf16 %v696, %v696
        %vm705 = vcmask 130048
        %v707 = vsel %vm705, %v537, 0
        %v710 = vsel %vm705, %v617, 0
        %712 = vmatprep.subr.bf16.mxu0 0
        %713 = vmatpush1.bf16.xpose.msra.mxu0 0
        %714 = vmatprep.subr.bf16.mxu0 0
        %715 = vmatpush1.bf16.xpose.msra.mxu0 0
        %716 = vmatprep.subr.bf16.mxu0 0
        %717 = vmatpush1.bf16.xpose.msra.mxu0 0
        %718 = vmatprep.subr.bf16.mxu0 0
        %719 = vmatpush1.bf16.xpose.msra.mxu0 0
        %720 = vmatprep.subr.bf16.mxu0 0
        %721 = vmatpush1.bf16.xpose.msra.mxu0 0
        %722 = vmatprep.subr.bf16.mxu0 0
        %723 = vmatpush1.bf16.xpose.msra.mxu0 0
        %724 = vmatprep.subr.bf16.mxu0 0
        %725 = vmatpush1.bf16.xpose.msra.mxu0 0
        %726 = vmatprep.subr.bf16.mxu0 0
        %727 = vmatpush1.bf16.xpose.msra.mxu0 %v710
        %728 = vmatprep.subr.bf16.mxu0 0
        %729 = vmatpush2.bf16.xpose.msra.mxu0 0
        %730 = vmatprep.subr.bf16.mxu0 0
        %731 = vmatpush2.bf16.xpose.msra.mxu0 0
        %732 = vmatprep.subr.bf16.mxu0 0
        %733 = vmatpush2.bf16.xpose.msra.mxu0 0
        %734 = vmatprep.subr.bf16.mxu0 0
        %735 = vmatpush2.bf16.xpose.msra.mxu0 0
        %736 = vmatprep.subr.bf16.mxu0 0
        %737 = vmatpush2.bf16.xpose.msra.mxu0 0
        %738 = vmatprep.subr.bf16.mxu0 0
        %739 = vmatpush2.bf16.xpose.msra.mxu0 0
        %740 = vmatprep.subr.bf16.mxu0 0
        %741 = vmatpush2.bf16.xpose.msra.mxu0 0
        %742 = vmatprep.subr.bf16.mxu0 0
        %743 = vmatpush2.bf16.xpose.msra.mxu0 0
        %744 = vmatprep.mubr.bf16.mxu0 0
        %745 = vmatmul.mubr.bf16.gmra.mxu0 %v707
        %v746 = vpop.f32.mrf.mxu0
        %v747 = vadd.f32 0.0, %v746
        %v748 = vpop.f32.mrf.mxu0
        %v749 = vpop.f32.mrf.mxu0
        %v750 = vpop.f32.mrf.mxu0
        %751 = vdwg.mxu0
        %v753 = vsel %vm705, %v538, 0
        %v756 = vsel %vm705, %v618, 0
        %758 = vmatprep.subr.bf16.mxu0 0
        %759 = vmatpush1.bf16.xpose.msra.mxu0 0
        %760 = vmatprep.subr.bf16.mxu0 0
        %761 = vmatpush1.bf16.xpose.msra.mxu0 0
        %762 = vmatprep.subr.bf16.mxu0 0
        %763 = vmatpush1.bf16.xpose.msra.mxu0 0
        %764 = vmatprep.subr.bf16.mxu0 0
        %765 = vmatpush1.bf16.xpose.msra.mxu0 0
        %766 = vmatprep.subr.bf16.mxu0 0
        %767 = vmatpush1.bf16.xpose.msra.mxu0 0
        %768 = vmatprep.subr.bf16.mxu0 0
        %769 = vmatpush1.bf16.xpose.msra.mxu0 0
        %770 = vmatprep.subr.bf16.mxu0 0
        %771 = vmatpush1.bf16.xpose.msra.mxu0 0
        %772 = vmatprep.subr.bf16.mxu0 0
        %773 = vmatpush1.bf16.xpose.msra.mxu0 %v756
        %774 = vmatprep.subr.bf16.mxu0 0
        %775 = vmatpush2.bf16.xpose.msra.mxu0 0
        %776 = vmatprep.subr.bf16.mxu0 0
        %777 = vmatpush2.bf16.xpose.msra.mxu0 0
        %778 = vmatprep.subr.bf16.mxu0 0
        %779 = vmatpush2.bf16.xpose.msra.mxu0 0
        %780 = vmatprep.subr.bf16.mxu0 0
        %781 = vmatpush2.bf16.xpose.msra.mxu0 0
        %782 = vmatprep.subr.bf16.mxu0 0
        %783 = vmatpush2.bf16.xpose.msra.mxu0 0
        %784 = vmatprep.subr.bf16.mxu0 0
        %785 = vmatpush2.bf16.xpose.msra.mxu0 0
        %786 = vmatprep.subr.bf16.mxu0 0
        %787 = vmatpush2.bf16.xpose.msra.mxu0 0
        %788 = vmatprep.subr.bf16.mxu0 0
        %789 = vmatpush2.bf16.xpose.msra.mxu0 0
        %790 = vmatprep.mubr.bf16.mxu0 0
        %791 = vmatmul.mubr.bf16.gmra.mxu0 %v753
        %v792 = vpop.f32.mrf.mxu0
        %v793 = vadd.f32 0.0, %v792
        %v794 = vpop.f32.mrf.mxu0
        %v795 = vpop.f32.mrf.mxu0
        %v796 = vpop.f32.mrf.mxu0
        %797 = vdwg.mxu0
        %v799 = vsel %vm705, %v539, 0
        %v802 = vsel %vm705, %v619, 0
        %804 = vmatprep.subr.bf16.mxu0 0
        %805 = vmatpush1.bf16.xpose.msra.mxu0 0
        %806 = vmatprep.subr.bf16.mxu0 0
        %807 = vmatpush1.bf16.xpose.msra.mxu0 0
        %808 = vmatprep.subr.bf16.mxu0 0
        %809 = vmatpush1.bf16.xpose.msra.mxu0 0
        %810 = vmatprep.subr.bf16.mxu0 0
        %811 = vmatpush1.bf16.xpose.msra.mxu0 0
        %812 = vmatprep.subr.bf16.mxu0 0
        %813 = vmatpush1.bf16.xpose.msra.mxu0 0
        %814 = vmatprep.subr.bf16.mxu0 0
        %815 = vmatpush1.bf16.xpose.msra.mxu0 0
        %816 = vmatprep.subr.bf16.mxu0 0
        %817 = vmatpush1.bf16.xpose.msra.mxu0 0
        %818 = vmatprep.subr.bf16.mxu0 0
        %819 = vmatpush1.bf16.xpose.msra.mxu0 %v802
        %820 = vmatprep.subr.bf16.mxu0 0
        %821 = vmatpush2.bf16.xpose.msra.mxu0 0
        %822 = vmatprep.subr.bf16.mxu0 0
        %823 = vmatpush2.bf16.xpose.msra.mxu0 0
        %824 = vmatprep.subr.bf16.mxu0 0
        %825 = vmatpush2.bf16.xpose.msra.mxu0 0
        %826 = vmatprep.subr.bf16.mxu0 0
        %827 = vmatpush2.bf16.xpose.msra.mxu0 0
        %828 = vmatprep.subr.bf16.mxu0 0
        %829 = vmatpush2.bf16.xpose.msra.mxu0 0
        %830 = vmatprep.subr.bf16.mxu0 0
        %831 = vmatpush2.bf16.xpose.msra.mxu0 0
        %832 = vmatprep.subr.bf16.mxu0 0
        %833 = vmatpush2.bf16.xpose.msra.mxu0 0
        %834 = vmatprep.subr.bf16.mxu0 0
        %835 = vmatpush2.bf16.xpose.msra.mxu0 0
        %836 = vmatprep.mubr.bf16.mxu0 0
        %837 = vmatmul.mubr.bf16.gmra.mxu0 %v799
        %v838 = vpop.f32.mrf.mxu0
        %v839 = vadd.f32 0.0, %v838
        %v840 = vpop.f32.mrf.mxu0
        %v841 = vpop.f32.mrf.mxu0
        %v842 = vpop.f32.mrf.mxu0
        %843 = vdwg.mxu0
        %v845 = vsel %vm705, %v540, 0
        %v848 = vsel %vm705, %v620, 0
        %850 = vmatprep.subr.bf16.mxu0 0
        %851 = vmatpush1.bf16.xpose.msra.mxu0 0
        %852 = vmatprep.subr.bf16.mxu0 0
        %853 = vmatpush1.bf16.xpose.msra.mxu0 0
        %854 = vmatprep.subr.bf16.mxu0 0
        %855 = vmatpush1.bf16.xpose.msra.mxu0 0
        %856 = vmatprep.subr.bf16.mxu0 0
        %857 = vmatpush1.bf16.xpose.msra.mxu0 0
        %858 = vmatprep.subr.bf16.mxu0 0
        %859 = vmatpush1.bf16.xpose.msra.mxu0 0
        %860 = vmatprep.subr.bf16.mxu0 0
        %861 = vmatpush1.bf16.xpose.msra.mxu0 0
        %862 = vmatprep.subr.bf16.mxu0 0
        %863 = vmatpush1.bf16.xpose.msra.mxu0 0
        %864 = vmatprep.subr.bf16.mxu0 0
        %865 = vmatpush1.bf16.xpose.msra.mxu0 %v848
        %866 = vmatprep.subr.bf16.mxu0 0
        %867 = vmatpush2.bf16.xpose.msra.mxu0 0
        %868 = vmatprep.subr.bf16.mxu0 0
        %869 = vmatpush2.bf16.xpose.msra.mxu0 0
        %870 = vmatprep.subr.bf16.mxu0 0
        %871 = vmatpush2.bf16.xpose.msra.mxu0 0
        %872 = vmatprep.subr.bf16.mxu0 0
        %873 = vmatpush2.bf16.xpose.msra.mxu0 0
        %874 = vmatprep.subr.bf16.mxu0 0
        %875 = vmatpush2.bf16.xpose.msra.mxu0 0
        %876 = vmatprep.subr.bf16.mxu0 0
        %877 = vmatpush2.bf16.xpose.msra.mxu0 0
        %878 = vmatprep.subr.bf16.mxu0 0
        %879 = vmatpush2.bf16.xpose.msra.mxu0 0
        %880 = vmatprep.subr.bf16.mxu0 0
        %881 = vmatpush2.bf16.xpose.msra.mxu0 0
        %882 = vmatprep.mubr.bf16.mxu0 0
        %883 = vmatmul.mubr.bf16.gmra.mxu0 %v845
        %v884 = vpop.f32.mrf.mxu0
        %v885 = vadd.f32 0.0, %v884
        %v886 = vpop.f32.mrf.mxu0
        %v887 = vpop.f32.mrf.mxu0
        %v888 = vpop.f32.mrf.mxu0
        %889 = vdwg.mxu0
        %v891 = vsel %vm705, %v541, 0
        %v894 = vsel %vm705, %v621, 0
        %896 = vmatprep.subr.bf16.mxu0 0
        %897 = vmatpush1.bf16.xpose.msra.mxu0 0
        %898 = vmatprep.subr.bf16.mxu0 0
        %899 = vmatpush1.bf16.xpose.msra.mxu0 0
        %900 = vmatprep.subr.bf16.mxu0 0
        %901 = vmatpush1.bf16.xpose.msra.mxu0 0
        %902 = vmatprep.subr.bf16.mxu0 0
        %903 = vmatpush1.bf16.xpose.msra.mxu0 0
        %904 = vmatprep.subr.bf16.mxu0 0
        %905 = vmatpush1.bf16.xpose.msra.mxu0 0
        %906 = vmatprep.subr.bf16.mxu0 0
        %907 = vmatpush1.bf16.xpose.msra.mxu0 0
        %908 = vmatprep.subr.bf16.mxu0 0
        %909 = vmatpush1.bf16.xpose.msra.mxu0 0
        %910 = vmatprep.subr.bf16.mxu0 0
        %911 = vmatpush1.bf16.xpose.msra.mxu0 %v894
        %912 = vmatprep.subr.bf16.mxu0 0
        %913 = vmatpush2.bf16.xpose.msra.mxu0 0
        %914 = vmatprep.subr.bf16.mxu0 0
        %915 = vmatpush2.bf16.xpose.msra.mxu0 0
        %916 = vmatprep.subr.bf16.mxu0 0
        %917 = vmatpush2.bf16.xpose.msra.mxu0 0
        %918 = vmatprep.subr.bf16.mxu0 0
        %919 = vmatpush2.bf16.xpose.msra.mxu0 0
        %920 = vmatprep.subr.bf16.mxu0 0
        %921 = vmatpush2.bf16.xpose.msra.mxu0 0
        %922 = vmatprep.subr.bf16.mxu0 0
        %923 = vmatpush2.bf16.xpose.msra.mxu0 0
        %924 = vmatprep.subr.bf16.mxu0 0
        %925 = vmatpush2.bf16.xpose.msra.mxu0 0
        %926 = vmatprep.subr.bf16.mxu0 0
        %927 = vmatpush2.bf16.xpose.msra.mxu0 0
        %928 = vmatprep.mubr.bf16.mxu0 0
        %929 = vmatmul.mubr.bf16.gmra.mxu0 %v891
        %v930 = vpop.f32.mrf.mxu0
        %v931 = vadd.f32 0.0, %v930
        %v932 = vpop.f32.mrf.mxu0
        %v933 = vpop.f32.mrf.mxu0
        %v934 = vpop.f32.mrf.mxu0
        %935 = vdwg.mxu0
        %v937 = vsel %vm705, %v542, 0
        %v940 = vsel %vm705, %v622, 0
        %942 = vmatprep.subr.bf16.mxu0 0
        %943 = vmatpush1.bf16.xpose.msra.mxu0 0
        %944 = vmatprep.subr.bf16.mxu0 0
        %945 = vmatpush1.bf16.xpose.msra.mxu0 0
        %946 = vmatprep.subr.bf16.mxu0 0
        %947 = vmatpush1.bf16.xpose.msra.mxu0 0
        %948 = vmatprep.subr.bf16.mxu0 0
        %949 = vmatpush1.bf16.xpose.msra.mxu0 0
        %950 = vmatprep.subr.bf16.mxu0 0
        %951 = vmatpush1.bf16.xpose.msra.mxu0 0
        %952 = vmatprep.subr.bf16.mxu0 0
        %953 = vmatpush1.bf16.xpose.msra.mxu0 0
        %954 = vmatprep.subr.bf16.mxu0 0
        %955 = vmatpush1.bf16.xpose.msra.mxu0 0
        %956 = vmatprep.subr.bf16.mxu0 0
        %957 = vmatpush1.bf16.xpose.msra.mxu0 %v940
        %958 = vmatprep.subr.bf16.mxu0 0
        %959 = vmatpush2.bf16.xpose.msra.mxu0 0
        %960 = vmatprep.subr.bf16.mxu0 0
        %961 = vmatpush2.bf16.xpose.msra.mxu0 0
        %962 = vmatprep.subr.bf16.mxu0 0
        %963 = vmatpush2.bf16.xpose.msra.mxu0 0
        %964 = vmatprep.subr.bf16.mxu0 0
        %965 = vmatpush2.bf16.xpose.msra.mxu0 0
        %966 = vmatprep.subr.bf16.mxu0 0
        %967 = vmatpush2.bf16.xpose.msra.mxu0 0
        %968 = vmatprep.subr.bf16.mxu0 0
        %969 = vmatpush2.bf16.xpose.msra.mxu0 0
        %970 = vmatprep.subr.bf16.mxu0 0
        %971 = vmatpush2.bf16.xpose.msra.mxu0 0
        %972 = vmatprep.subr.bf16.mxu0 0
        %973 = vmatpush2.bf16.xpose.msra.mxu0 0
        %974 = vmatprep.mubr.bf16.mxu0 0
        %975 = vmatmul.mubr.bf16.gmra.mxu0 %v937
        %v976 = vpop.f32.mrf.mxu0
        %v977 = vadd.f32 0.0, %v976
        %v978 = vpop.f32.mrf.mxu0
        %v979 = vpop.f32.mrf.mxu0
        %v980 = vpop.f32.mrf.mxu0
        %981 = vdwg.mxu0
        %v983 = vsel %vm705, %v543, 0
        %v986 = vsel %vm705, %v623, 0
        %988 = vmatprep.subr.bf16.mxu0 0
        %989 = vmatpush1.bf16.xpose.msra.mxu0 0
        %990 = vmatprep.subr.bf16.mxu0 0
        %991 = vmatpush1.bf16.xpose.msra.mxu0 0
        %992 = vmatprep.subr.bf16.mxu0 0
        %993 = vmatpush1.bf16.xpose.msra.mxu0 0
        %994 = vmatprep.subr.bf16.mxu0 0
        %995 = vmatpush1.bf16.xpose.msra.mxu0 0
        %996 = vmatprep.subr.bf16.mxu0 0
        %997 = vmatpush1.bf16.xpose.msra.mxu0 0
        %998 = vmatprep.subr.bf16.mxu0 0
        %999 = vmatpush1.bf16.xpose.msra.mxu0 0
        %1000 = vmatprep.subr.bf16.mxu0 0
        %1001 = vmatpush1.bf16.xpose.msra.mxu0 0
        %1002 = vmatprep.subr.bf16.mxu0 0
        %1003 = vmatpush1.bf16.xpose.msra.mxu0 %v986
        %1004 = vmatprep.subr.bf16.mxu0 0
        %1005 = vmatpush2.bf16.xpose.msra.mxu0 0
        %1006 = vmatprep.subr.bf16.mxu0 0
        %1007 = vmatpush2.bf16.xpose.msra.mxu0 0
        %1008 = vmatprep.subr.bf16.mxu0 0
        %1009 = vmatpush2.bf16.xpose.msra.mxu0 0
        %1010 = vmatprep.subr.bf16.mxu0 0
        %1011 = vmatpush2.bf16.xpose.msra.mxu0 0
        %1012 = vmatprep.subr.bf16.mxu0 0
        %1013 = vmatpush2.bf16.xpose.msra.mxu0 0
        %1014 = vmatprep.subr.bf16.mxu0 0
        %1015 = vmatpush2.bf16.xpose.msra.mxu0 0
        %1016 = vmatprep.subr.bf16.mxu0 0
        %1017 = vmatpush2.bf16.xpose.msra.mxu0 0
        %1018 = vmatprep.subr.bf16.mxu0 0
        %1019 = vmatpush2.bf16.xpose.msra.mxu0 0
        %1020 = vmatprep.mubr.bf16.mxu0 0
        %1021 = vmatmul.mubr.bf16.gmra.mxu0 %v983
        %v1022 = vpop.f32.mrf.mxu0
        %v1023 = vadd.f32 0.0, %v1022
        %v1024 = vpop.f32.mrf.mxu0
        %v1025 = vpop.f32.mrf.mxu0
        %v1026 = vpop.f32.mrf.mxu0
        %1027 = vdwg.mxu0
        %v1029 = vsel %vm705, %v544, 0
        %v1032 = vsel %vm705, %v624, 0
        %1034 = vmatprep.subr.bf16.mxu0 0
        %1035 = vmatpush1.bf16.xpose.msra.mxu0 0
        %1036 = vmatprep.subr.bf16.mxu0 0
        %1037 = vmatpush1.bf16.xpose.msra.mxu0 0
        %1038 = vmatprep.subr.bf16.mxu0 0
        %1039 = vmatpush1.bf16.xpose.msra.mxu0 0
        %1040 = vmatprep.subr.bf16.mxu0 0
        %1041 = vmatpush1.bf16.xpose.msra.mxu0 0
        %1042 = vmatprep.subr.bf16.mxu0 0
        %1043 = vmatpush1.bf16.xpose.msra.mxu0 0
        %1044 = vmatprep.subr.bf16.mxu0 0
        %1045 = vmatpush1.bf16.xpose.msra.mxu0 0
        %1046 = vmatprep.subr.bf16.mxu0 0
        %1047 = vmatpush1.bf16.xpose.msra.mxu0 0
        %1048 = vmatprep.subr.bf16.mxu0 0
        %1049 = vmatpush1.bf16.xpose.msra.mxu0 %v1032
        %1050 = vmatprep.subr.bf16.mxu0 0
        %1051 = vmatpush2.bf16.xpose.msra.mxu0 0
        %1052 = vmatprep.subr.bf16.mxu0 0
        %1053 = vmatpush2.bf16.xpose.msra.mxu0 0
        %1054 = vmatprep.subr.bf16.mxu0 0
        %1055 = vmatpush2.bf16.xpose.msra.mxu0 0
        %1056 = vmatprep.subr.bf16.mxu0 0
        %1057 = vmatpush2.bf16.xpose.msra.mxu0 0
        %1058 = vmatprep.subr.bf16.mxu0 0
        %1059 = vmatpush2.bf16.xpose.msra.mxu0 0
        %1060 = vmatprep.subr.bf16.mxu0 0
        %1061 = vmatpush2.bf16.xpose.msra.mxu0 0
        %1062 = vmatprep.subr.bf16.mxu0 0
        %1063 = vmatpush2.bf16.xpose.msra.mxu0 0
        %1064 = vmatprep.subr.bf16.mxu0 0
        %1065 = vmatpush2.bf16.xpose.msra.mxu0 0
        %1066 = vmatprep.mubr.bf16.mxu0 0
        %1067 = vmatmul.mubr.bf16.gmra.mxu0 %v1029
        %v1068 = vpop.f32.mrf.mxu0
        %v1069 = vadd.f32 0.0, %v1068
        %v1070 = vpop.f32.mrf.mxu0
        %v1071 = vpop.f32.mrf.mxu0
        %v1072 = vpop.f32.mrf.mxu0
        %1073 = vdwg.mxu0
        %v1074 = vmul.f32 %v747, 0.25
        %v1075 = vmul.f32 %v793, 0.25
        %v1076 = vmul.f32 %v839, 0.25
        %v1077 = vmul.f32 %v885, 0.25
        %v1078 = vmul.f32 %v931, 0.25
        %v1079 = vmul.f32 %v977, 0.25
        %v1080 = vmul.f32 %v1023, 0.25
        %v1081 = vmul.f32 %v1069, 0.25
        %vm1082 = vcmask 9216
        %v1083 = vsel %vm1082, %v1074, -inf
        %1084 = vmax.xlane.f32.xlu0 %v1083
        %v1085 = vpop.xlane.xlu0 %1084
        %v1086 = vsel %vm1082, %v1075, -inf
        %1087 = vmax.xlane.f32.xlu0 %v1086
        %v1088 = vpop.xlane.xlu0 %1087
        %v1089 = vsel %vm1082, %v1076, -inf
        %1090 = vmax.xlane.f32.xlu0 %v1089
        %v1091 = vpop.xlane.xlu0 %1090
        %v1092 = vsel %vm1082, %v1077, -inf
        %1093 = vmax.xlane.f32.xlu0 %v1092
        %v1094 = vpop.xlane.xlu0 %1093
        %v1095 = vsel %vm1082, %v1078, -inf
        %1096 = vmax.xlane.f32.xlu0 %v1095
        %v1097 = vpop.xlane.xlu0 %1096
        %v1098 = vsel %vm1082, %v1079, -inf
        %1099 = vmax.xlane.f32.xlu0 %v1098
        %v1100 = vpop.xlane.xlu0 %1099
        %v1101 = vsel %vm1082, %v1080, -inf
        %1102 = vmax.xlane.f32.xlu0 %v1101
        %v1103 = vpop.xlane.xlu0 %1102
        %v1104 = vsel %vm1082, %v1081, -inf
        %1105 = vmax.xlane.f32.xlu0 %v1104
        %v1106 = vpop.xlane.xlu0 %1105
        %v1107 = vsub.f32 %v1074, %v1085
        %v1108 = vsub.f32 %v1075, %v1088
        %v1109 = vsub.f32 %v1076, %v1091
        %v1110 = vsub.f32 %v1077, %v1094
        %v1111 = vsub.f32 %v1078, %v1097
        %v1112 = vsub.f32 %v1079, %v1100
        %v1113 = vsub.f32 %v1080, %v1103
        %v1114 = vsub.f32 %v1081, %v1106
        %v1115 = vmul.f32 %v1107, 1.442695
        %v1116 = vpow.pop %v1115
        %v1117 = vmul.f32 %v1108, 1.442695
        %v1118 = vpow.pop %v1117
        %v1119 = vmul.f32 %v1109, 1.442695
        %v1120 = vpow.pop %v1119
        %v1121 = vmul.f32 %v1110, 1.442695
        %v1122 = vpow.pop %v1121
        %v1123 = vmul.f32 %v1111, 1.442695
        %v1124 = vpow.pop %v1123
        %v1125 = vmul.f32 %v1112, 1.442695
        %v1126 = vpow.pop %v1125
        %v1127 = vmul.f32 %v1113, 1.442695
        %v1128 = vpow.pop %v1127
        %v1129 = vmul.f32 %v1114, 1.442695
        %v1130 = vpow.pop %v1129
        %v1131 = vsel %vm1082, %v1116, 0.0
        %1132 = vadd.xlane.f32.xlu0 %v1131
        %v1133 = vpop.xlane.xlu0 %1132
        %v1134 = vsel %vm1082, %v1118, 0.0
        %1135 = vadd.xlane.f32.xlu0 %v1134
        %v1136 = vpop.xlane.xlu0 %1135
        %v1137 = vsel %vm1082, %v1120, 0.0
        %1138 = vadd.xlane.f32.xlu0 %v1137
        %v1139 = vpop.xlane.xlu0 %1138
        %v1140 = vsel %vm1082, %v1122, 0.0
        %1141 = vadd.xlane.f32.xlu0 %v1140
        %v1142 = vpop.xlane.xlu0 %1141
        %v1143 = vsel %vm1082, %v1124, 0.0
        %1144 = vadd.xlane.f32.xlu0 %v1143
        %v1145 = vpop.xlane.xlu0 %1144
        %v1146 = vsel %vm1082, %v1126, 0.0
        %1147 = vadd.xlane.f32.xlu0 %v1146
        %v1148 = vpop.xlane.xlu0 %1147
        %v1149 = vsel %vm1082, %v1128, 0.0
        %1150 = vadd.xlane.f32.xlu0 %v1149
        %v1151 = vpop.xlane.xlu0 %1150
        %v1152 = vsel %vm1082, %v1130, 0.0
        %1153 = vadd.xlane.f32.xlu0 %v1152
        %v1154 = vpop.xlane.xlu0 %1153
        %v1155 = vrcp.pop %v1133
        %v1156 = vrcp.pop %v1136
        %v1157 = vrcp.pop %v1139
        %v1158 = vrcp.pop %v1142
        %v1159 = vrcp.pop %v1145
        %v1160 = vrcp.pop %v1148
        %v1161 = vrcp.pop %v1151
        %v1162 = vrcp.pop %v1154
        %v1163 = vmul.f32 %v1116, %v1155
        %v1164 = vmul.f32 %v1118, %v1156
        %v1165 = vmul.f32 %v1120, %v1157
        %v1166 = vmul.f32 %v1122, %v1158
        %v1167 = vmul.f32 %v1124, %v1159
        %v1168 = vmul.f32 %v1126, %v1160
        %v1169 = vmul.f32 %v1128, %v1161
        %v1170 = vmul.f32 %v1130, %v1162
        %v1171 = vpack.c.bf16 %v1163, %v1163
        %v1172 = vpack.c.bf16 %v1164, %v1164
        %v1173 = vpack.c.bf16 %v1165, %v1165
        %v1174 = vpack.c.bf16 %v1166, %v1166
        %v1175 = vpack.c.bf16 %v1167, %v1167
        %v1176 = vpack.c.bf16 %v1168, %v1168
        %v1177 = vpack.c.bf16 %v1169, %v1169
        %v1178 = vpack.c.bf16 %v1170, %v1170
        %vm1179 = vcmask 15360
        %v1181 = vsel %vm1179, %v1171, 0
        %vm1183 = vcmask 1040384
        %v1185 = vsel %vm1183, %v697, 0
        %1187 = vmatprep.subr.bf16.mxu0 0
        %1188 = vmatpush1.bf16.msra.mxu0 0
        %1189 = vmatprep.subr.bf16.mxu0 0
        %1190 = vmatpush1.bf16.msra.mxu0 0
        %1191 = vmatprep.subr.bf16.mxu0 0
        %1192 = vmatpush1.bf16.msra.mxu0 0
        %1193 = vmatprep.subr.bf16.mxu0 0
        %1194 = vmatpush1.bf16.msra.mxu0 0
        %1195 = vmatprep.subr.bf16.mxu0 0
        %1196 = vmatpush1.bf16.msra.mxu0 0
        %1197 = vmatprep.subr.bf16.mxu0 0
        %1198 = vmatpush1.bf16.msra.mxu0 0
        %1199 = vmatprep.subr.bf16.mxu0 0
        %1200 = vmatpush1.bf16.msra.mxu0 0
        %1201 = vmatprep.subr.bf16.mxu0 0
        %1202 = vmatpush1.bf16.msra.mxu0 %v1185
        %1203 = vmatprep.subr.bf16.mxu0 0
        %1204 = vmatpush2.bf16.msra.mxu0 0
        %1205 = vmatprep.subr.bf16.mxu0 0
        %1206 = vmatpush2.bf16.msra.mxu0 0
        %1207 = vmatprep.subr.bf16.mxu0 0
        %1208 = vmatpush2.bf16.msra.mxu0 0
        %1209 = vmatprep.subr.bf16.mxu0 0
        %1210 = vmatpush2.bf16.msra.mxu0 0
        %1211 = vmatprep.subr.bf16.mxu0 0
        %1212 = vmatpush2.bf16.msra.mxu0 0
        %1213 = vmatprep.subr.bf16.mxu0 0
        %1214 = vmatpush2.bf16.msra.mxu0 0
        %1215 = vmatprep.subr.bf16.mxu0 0
        %1216 = vmatpush2.bf16.msra.mxu0 0
        %1217 = vmatprep.subr.bf16.mxu0 0
        %1218 = vmatpush2.bf16.msra.mxu0 0
        %1219 = vmatprep.mubr.bf16.mxu0 0
        %1220 = vmatmul.mubr.bf16.gmra.mxu0 %v1181
        %v1221 = vpop.f32.mrf.mxu0
        %v1222 = vadd.f32 0.0, %v1221
        %v1223 = vpop.f32.mrf.mxu0
        %v1224 = vpop.f32.mrf.mxu0
        %v1225 = vpop.f32.mrf.mxu0
        %1226 = vdwg.mxu0
        %v1228 = vsel %vm1179, %v1172, 0
        %v1231 = vsel %vm1183, %v698, 0
        %1233 = vmatprep.subr.bf16.mxu0 0
        %1234 = vmatpush1.bf16.msra.mxu0 0
        %1235 = vmatprep.subr.bf16.mxu0 0
        %1236 = vmatpush1.bf16.msra.mxu0 0
        %1237 = vmatprep.subr.bf16.mxu0 0
        %1238 = vmatpush1.bf16.msra.mxu0 0
        %1239 = vmatprep.subr.bf16.mxu0 0
        %1240 = vmatpush1.bf16.msra.mxu0 0
        %1241 = vmatprep.subr.bf16.mxu0 0
        %1242 = vmatpush1.bf16.msra.mxu0 0
        %1243 = vmatprep.subr.bf16.mxu0 0
        %1244 = vmatpush1.bf16.msra.mxu0 0
        %1245 = vmatprep.subr.bf16.mxu0 0
        %1246 = vmatpush1.bf16.msra.mxu0 0
        %1247 = vmatprep.subr.bf16.mxu0 0
        %1248 = vmatpush1.bf16.msra.mxu0 %v1231
        %1249 = vmatprep.subr.bf16.mxu0 0
        %1250 = vmatpush2.bf16.msra.mxu0 0
        %1251 = vmatprep.subr.bf16.mxu0 0
        %1252 = vmatpush2.bf16.msra.mxu0 0
        %1253 = vmatprep.subr.bf16.mxu0 0
        %1254 = vmatpush2.bf16.msra.mxu0 0
        %1255 = vmatprep.subr.bf16.mxu0 0
        %1256 = vmatpush2.bf16.msra.mxu0 0
        %1257 = vmatprep.subr.bf16.mxu0 0
        %1258 = vmatpush2.bf16.msra.mxu0 0
        %1259 = vmatprep.subr.bf16.mxu0 0
        %1260 = vmatpush2.bf16.msra.mxu0 0
        %1261 = vmatprep.subr.bf16.mxu0 0
        %1262 = vmatpush2.bf16.msra.mxu0 0
        %1263 = vmatprep.subr.bf16.mxu0 0
        %1264 = vmatpush2.bf16.msra.mxu0 0
        %1265 = vmatprep.mubr.bf16.mxu0 0
        %1266 = vmatmul.mubr.bf16.gmra.mxu0 %v1228
        %v1267 = vpop.f32.mrf.mxu0
        %v1268 = vadd.f32 0.0, %v1267
        %v1269 = vpop.f32.mrf.mxu0
        %v1270 = vpop.f32.mrf.mxu0
        %v1271 = vpop.f32.mrf.mxu0
        %1272 = vdwg.mxu0
        %v1274 = vsel %vm1179, %v1173, 0
        %v1277 = vsel %vm1183, %v699, 0
        %1279 = vmatprep.subr.bf16.mxu0 0
        %1280 = vmatpush1.bf16.msra.mxu0 0
        %1281 = vmatprep.subr.bf16.mxu0 0
        %1282 = vmatpush1.bf16.msra.mxu0 0
        %1283 = vmatprep.subr.bf16.mxu0 0
        %1284 = vmatpush1.bf16.msra.mxu0 0
        %1285 = vmatprep.subr.bf16.mxu0 0
        %1286 = vmatpush1.bf16.msra.mxu0 0
        %1287 = vmatprep.subr.bf16.mxu0 0
        %1288 = vmatpush1.bf16.msra.mxu0 0
        %1289 = vmatprep.subr.bf16.mxu0 0
        %1290 = vmatpush1.bf16.msra.mxu0 0
        %1291 = vmatprep.subr.bf16.mxu0 0
        %1292 = vmatpush1.bf16.msra.mxu0 0
        %1293 = vmatprep.subr.bf16.mxu0 0
        %1294 = vmatpush1.bf16.msra.mxu0 %v1277
        %1295 = vmatprep.subr.bf16.mxu0 0
        %1296 = vmatpush2.bf16.msra.mxu0 0
        %1297 = vmatprep.subr.bf16.mxu0 0
        %1298 = vmatpush2.bf16.msra.mxu0 0
        %1299 = vmatprep.subr.bf16.mxu0 0
        %1300 = vmatpush2.bf16.msra.mxu0 0
        %1301 = vmatprep.subr.bf16.mxu0 0
        %1302 = vmatpush2.bf16.msra.mxu0 0
        %1303 = vmatprep.subr.bf16.mxu0 0
        %1304 = vmatpush2.bf16.msra.mxu0 0
        %1305 = vmatprep.subr.bf16.mxu0 0
        %1306 = vmatpush2.bf16.msra.mxu0 0
        %1307 = vmatprep.subr.bf16.mxu0 0
        %1308 = vmatpush2.bf16.msra.mxu0 0
        %1309 = vmatprep.subr.bf16.mxu0 0
        %1310 = vmatpush2.bf16.msra.mxu0 0
        %1311 = vmatprep.mubr.bf16.mxu0 0
        %1312 = vmatmul.mubr.bf16.gmra.mxu0 %v1274
        %v1313 = vpop.f32.mrf.mxu0
        %v1314 = vadd.f32 0.0, %v1313
        %v1315 = vpop.f32.mrf.mxu0
        %v1316 = vpop.f32.mrf.mxu0
        %v1317 = vpop.f32.mrf.mxu0
        %1318 = vdwg.mxu0
        %v1320 = vsel %vm1179, %v1174, 0
        %v1323 = vsel %vm1183, %v700, 0
        %1325 = vmatprep.subr.bf16.mxu0 0
        %1326 = vmatpush1.bf16.msra.mxu0 0
        %1327 = vmatprep.subr.bf16.mxu0 0
        %1328 = vmatpush1.bf16.msra.mxu0 0
        %1329 = vmatprep.subr.bf16.mxu0 0
        %1330 = vmatpush1.bf16.msra.mxu0 0
        %1331 = vmatprep.subr.bf16.mxu0 0
        %1332 = vmatpush1.bf16.msra.mxu0 0
        %1333 = vmatprep.subr.bf16.mxu0 0
        %1334 = vmatpush1.bf16.msra.mxu0 0
        %1335 = vmatprep.subr.bf16.mxu0 0
        %1336 = vmatpush1.bf16.msra.mxu0 0
        %1337 = vmatprep.subr.bf16.mxu0 0
        %1338 = vmatpush1.bf16.msra.mxu0 0
        %1339 = vmatprep.subr.bf16.mxu0 0
        %1340 = vmatpush1.bf16.msra.mxu0 %v1323
        %1341 = vmatprep.subr.bf16.mxu0 0
        %1342 = vmatpush2.bf16.msra.mxu0 0
        %1343 = vmatprep.subr.bf16.mxu0 0
        %1344 = vmatpush2.bf16.msra.mxu0 0
        %1345 = vmatprep.subr.bf16.mxu0 0
        %1346 = vmatpush2.bf16.msra.mxu0 0
        %1347 = vmatprep.subr.bf16.mxu0 0
        %1348 = vmatpush2.bf16.msra.mxu0 0
        %1349 = vmatprep.subr.bf16.mxu0 0
        %1350 = vmatpush2.bf16.msra.mxu0 0
        %1351 = vmatprep.subr.bf16.mxu0 0
        %1352 = vmatpush2.bf16.msra.mxu0 0
        %1353 = vmatprep.subr.bf16.mxu0 0
        %1354 = vmatpush2.bf16.msra.mxu0 0
        %1355 = vmatprep.subr.bf16.mxu0 0
        %1356 = vmatpush2.bf16.msra.mxu0 0
        %1357 = vmatprep.mubr.bf16.mxu0 0
        %1358 = vmatmul.mubr.bf16.gmra.mxu0 %v1320
        %v1359 = vpop.f32.mrf.mxu0
        %v1360 = vadd.f32 0.0, %v1359
        %v1361 = vpop.f32.mrf.mxu0
        %v1362 = vpop.f32.mrf.mxu0
        %v1363 = vpop.f32.mrf.mxu0
        %1364 = vdwg.mxu0
        %v1366 = vsel %vm1179, %v1175, 0
        %v1369 = vsel %vm1183, %v701, 0
        %1371 = vmatprep.subr.bf16.mxu0 0
        %1372 = vmatpush1.bf16.msra.mxu0 0
        %1373 = vmatprep.subr.bf16.mxu0 0
        %1374 = vmatpush1.bf16.msra.mxu0 0
        %1375 = vmatprep.subr.bf16.mxu0 0
        %1376 = vmatpush1.bf16.msra.mxu0 0
        %1377 = vmatprep.subr.bf16.mxu0 0
        %1378 = vmatpush1.bf16.msra.mxu0 0
        %1379 = vmatprep.subr.bf16.mxu0 0
        %1380 = vmatpush1.bf16.msra.mxu0 0
        %1381 = vmatprep.subr.bf16.mxu0 0
        %1382 = vmatpush1.bf16.msra.mxu0 0
        %1383 = vmatprep.subr.bf16.mxu0 0
        %1384 = vmatpush1.bf16.msra.mxu0 0
        %1385 = vmatprep.subr.bf16.mxu0 0
        %1386 = vmatpush1.bf16.msra.mxu0 %v1369
        %1387 = vmatprep.subr.bf16.mxu0 0
        %1388 = vmatpush2.bf16.msra.mxu0 0
        %1389 = vmatprep.subr.bf16.mxu0 0
        %1390 = vmatpush2.bf16.msra.mxu0 0
        %1391 = vmatprep.subr.bf16.mxu0 0
        %1392 = vmatpush2.bf16.msra.mxu0 0
        %1393 = vmatprep.subr.bf16.mxu0 0
        %1394 = vmatpush2.bf16.msra.mxu0 0
        %1395 = vmatprep.subr.bf16.mxu0 0
        %1396 = vmatpush2.bf16.msra.mxu0 0
        %1397 = vmatprep.subr.bf16.mxu0 0
        %1398 = vmatpush2.bf16.msra.mxu0 0
        %1399 = vmatprep.subr.bf16.mxu0 0
        %1400 = vmatpush2.bf16.msra.mxu0 0
        %1401 = vmatprep.subr.bf16.mxu0 0
        %1402 = vmatpush2.bf16.msra.mxu0 0
        %1403 = vmatprep.mubr.bf16.mxu0 0
        %1404 = vmatmul.mubr.bf16.gmra.mxu0 %v1366
        %v1405 = vpop.f32.mrf.mxu0
        %v1406 = vadd.f32 0.0, %v1405
        %v1407 = vpop.f32.mrf.mxu0
        %v1408 = vpop.f32.mrf.mxu0
        %v1409 = vpop.f32.mrf.mxu0
        %1410 = vdwg.mxu0
        %v1412 = vsel %vm1179, %v1176, 0
        %v1415 = vsel %vm1183, %v702, 0
        %1417 = vmatprep.subr.bf16.mxu0 0
        %1418 = vmatpush1.bf16.msra.mxu0 0
        %1419 = vmatprep.subr.bf16.mxu0 0
        %1420 = vmatpush1.bf16.msra.mxu0 0
        %1421 = vmatprep.subr.bf16.mxu0 0
        %1422 = vmatpush1.bf16.msra.mxu0 0
        %1423 = vmatprep.subr.bf16.mxu0 0
        %1424 = vmatpush1.bf16.msra.mxu0 0
        %1425 = vmatprep.subr.bf16.mxu0 0
        %1426 = vmatpush1.bf16.msra.mxu0 0
        %1427 = vmatprep.subr.bf16.mxu0 0
        %1428 = vmatpush1.bf16.msra.mxu0 0
        %1429 = vmatprep.subr.bf16.mxu0 0
        %1430 = vmatpush1.bf16.msra.mxu0 0
        %1431 = vmatprep.subr.bf16.mxu0 0
        %1432 = vmatpush1.bf16.msra.mxu0 %v1415
        %1433 = vmatprep.subr.bf16.mxu0 0
        %1434 = vmatpush2.bf16.msra.mxu0 0
        %1435 = vmatprep.subr.bf16.mxu0 0
        %1436 = vmatpush2.bf16.msra.mxu0 0
        %1437 = vmatprep.subr.bf16.mxu0 0
        %1438 = vmatpush2.bf16.msra.mxu0 0
        %1439 = vmatprep.subr.bf16.mxu0 0
        %1440 = vmatpush2.bf16.msra.mxu0 0
        %1441 = vmatprep.subr.bf16.mxu0 0
        %1442 = vmatpush2.bf16.msra.mxu0 0
        %1443 = vmatprep.subr.bf16.mxu0 0
        %1444 = vmatpush2.bf16.msra.mxu0 0
        %1445 = vmatprep.subr.bf16.mxu0 0
        %1446 = vmatpush2.bf16.msra.mxu0 0
        %1447 = vmatprep.subr.bf16.mxu0 0
        %1448 = vmatpush2.bf16.msra.mxu0 0
        %1449 = vmatprep.mubr.bf16.mxu0 0
        %1450 = vmatmul.mubr.bf16.gmra.mxu0 %v1412
        %v1451 = vpop.f32.mrf.mxu0
        %v1452 = vadd.f32 0.0, %v1451
        %v1453 = vpop.f32.mrf.mxu0
        %v1454 = vpop.f32.mrf.mxu0
        %v1455 = vpop.f32.mrf.mxu0
        %1456 = vdwg.mxu0
        %v1458 = vsel %vm1179, %v1177, 0
        %v1461 = vsel %vm1183, %v703, 0
        %1463 = vmatprep.subr.bf16.mxu0 0
        %1464 = vmatpush1.bf16.msra.mxu0 0
        %1465 = vmatprep.subr.bf16.mxu0 0
        %1466 = vmatpush1.bf16.msra.mxu0 0
        %1467 = vmatprep.subr.bf16.mxu0 0
        %1468 = vmatpush1.bf16.msra.mxu0 0
        %1469 = vmatprep.subr.bf16.mxu0 0
        %1470 = vmatpush1.bf16.msra.mxu0 0
        %1471 = vmatprep.subr.bf16.mxu0 0
        %1472 = vmatpush1.bf16.msra.mxu0 0
        %1473 = vmatprep.subr.bf16.mxu0 0
        %1474 = vmatpush1.bf16.msra.mxu0 0
        %1475 = vmatprep.subr.bf16.mxu0 0
        %1476 = vmatpush1.bf16.msra.mxu0 0
        %1477 = vmatprep.subr.bf16.mxu0 0
        %1478 = vmatpush1.bf16.msra.mxu0 %v1461
        %1479 = vmatprep.subr.bf16.mxu0 0
        %1480 = vmatpush2.bf16.msra.mxu0 0
        %1481 = vmatprep.subr.bf16.mxu0 0
        %1482 = vmatpush2.bf16.msra.mxu0 0
        %1483 = vmatprep.subr.bf16.mxu0 0
        %1484 = vmatpush2.bf16.msra.mxu0 0
        %1485 = vmatprep.subr.bf16.mxu0 0
        %1486 = vmatpush2.bf16.msra.mxu0 0
        %1487 = vmatprep.subr.bf16.mxu0 0
        %1488 = vmatpush2.bf16.msra.mxu0 0
        %1489 = vmatprep.subr.bf16.mxu0 0
        %1490 = vmatpush2.bf16.msra.mxu0 0
        %1491 = vmatprep.subr.bf16.mxu0 0
        %1492 = vmatpush2.bf16.msra.mxu0 0
        %1493 = vmatprep.subr.bf16.mxu0 0
        %1494 = vmatpush2.bf16.msra.mxu0 0
        %1495 = vmatprep.mubr.bf16.mxu0 0
        %1496 = vmatmul.mubr.bf16.gmra.mxu0 %v1458
        %v1497 = vpop.f32.mrf.mxu0
        %v1498 = vadd.f32 0.0, %v1497
        %v1499 = vpop.f32.mrf.mxu0
        %v1500 = vpop.f32.mrf.mxu0
        %v1501 = vpop.f32.mrf.mxu0
        %1502 = vdwg.mxu0
        %v1504 = vsel %vm1179, %v1178, 0
        %v1507 = vsel %vm1183, %v704, 0
        %1509 = vmatprep.subr.bf16.mxu0 0
        %1510 = vmatpush1.bf16.msra.mxu0 0
        %1511 = vmatprep.subr.bf16.mxu0 0
        %1512 = vmatpush1.bf16.msra.mxu0 0
        %1513 = vmatprep.subr.bf16.mxu0 0
        %1514 = vmatpush1.bf16.msra.mxu0 0
        %1515 = vmatprep.subr.bf16.mxu0 0
        %1516 = vmatpush1.bf16.msra.mxu0 0
        %1517 = vmatprep.subr.bf16.mxu0 0
        %1518 = vmatpush1.bf16.msra.mxu0 0
        %1519 = vmatprep.subr.bf16.mxu0 0
        %1520 = vmatpush1.bf16.msra.mxu0 0
        %1521 = vmatprep.subr.bf16.mxu0 0
        %1522 = vmatpush1.bf16.msra.mxu0 0
        %1523 = vmatprep.subr.bf16.mxu0 0
        %1524 = vmatpush1.bf16.msra.mxu0 %v1507
        %1525 = vmatprep.subr.bf16.mxu0 0
        %1526 = vmatpush2.bf16.msra.mxu0 0
        %1527 = vmatprep.subr.bf16.mxu0 0
        %1528 = vmatpush2.bf16.msra.mxu0 0
        %1529 = vmatprep.subr.bf16.mxu0 0
        %1530 = vmatpush2.bf16.msra.mxu0 0
        %1531 = vmatprep.subr.bf16.mxu0 0
        %1532 = vmatpush2.bf16.msra.mxu0 0
        %1533 = vmatprep.subr.bf16.mxu0 0
        %1534 = vmatpush2.bf16.msra.mxu0 0
        %1535 = vmatprep.subr.bf16.mxu0 0
        %1536 = vmatpush2.bf16.msra.mxu0 0
        %1537 = vmatprep.subr.bf16.mxu0 0
        %1538 = vmatpush2.bf16.msra.mxu0 0
        %1539 = vmatprep.subr.bf16.mxu0 0
        %1540 = vmatpush2.bf16.msra.mxu0 0
        %1541 = vmatprep.mubr.bf16.mxu0 0
        %1542 = vmatmul.mubr.bf16.gmra.mxu0 %v1504
        %v1543 = vpop.f32.mrf.mxu0
        %v1544 = vadd.f32 0.0, %v1543
        %v1545 = vpop.f32.mrf.mxu0
        %v1546 = vpop.f32.mrf.mxu0
        %v1547 = vpop.f32.mrf.mxu0
        %1548 = vdwg.mxu0
        %v1549 = vcombine.low %v1222, %v1314
        %v1551 = vunpack.c.l.s4 1983009808
        %v1552 = vunpack.c.0.s8 %v1551
        %v1553 = vlaneseq
        %v1554 = vshrl.u32 %v1553, 7
        %v1555 = vsub.s32 %v1552, %v1554
        %v1556 = vrot.slane %v1549, %v1555
        %v1557 = vcombine.low %v1268, %v1360
        %v1559 = vunpack.c.l.s4 1983009808
        %v1560 = vunpack.c.0.s8 %v1559
        %v1561 = vlaneseq
        %v1562 = vshrl.u32 %v1561, 7
        %v1563 = vsub.s32 %v1560, %v1562
        %v1564 = vrot.slane %v1557, %v1563
        %v1565 = vcombine.low %v1406, %v1498
        %v1567 = vunpack.c.l.s4 1983009808
        %v1568 = vunpack.c.0.s8 %v1567
        %v1569 = vlaneseq
        %v1570 = vshrl.u32 %v1569, 7
        %v1571 = vsub.s32 %v1568, %v1570
        %v1572 = vrot.slane %v1565, %v1571
        %v1573 = vcombine.low %v1452, %v1544
        %v1575 = vunpack.c.l.s4 1983009808
        %v1576 = vunpack.c.0.s8 %v1575
        %v1577 = vlaneseq
        %v1578 = vshrl.u32 %v1577, 7
        %v1579 = vsub.s32 %v1576, %v1578
        %v1580 = vrot.slane %v1573, %v1579
        %v1581 = vcombine.low %v1556, %v1564
        %v1583 = vunpack.c.l.s4 1934713408
        %v1584 = vunpack.c.0.s8 %v1583
        %v1585 = vlaneseq
        %v1586 = vshrl.u32 %v1585, 7
        %v1587 = vsub.s32 %v1584, %v1586
        %v1588 = vrot.slane %v1581, %v1587
        %v1589 = vcombine.low %v1572, %v1580
        %v1591 = vunpack.c.l.s4 1934713408
        %v1592 = vunpack.c.0.s8 %v1591
        %v1593 = vlaneseq
        %v1594 = vshrl.u32 %v1593, 7
        %v1595 = vsub.s32 %v1592, %v1594
        %v1596 = vrot.slane %v1589, %v1595
        %v1597 = vcombine.low %v1588, %v1596
        %v1598 = vcombine.high %v1588, %v1596
        %1600 = vrot.lane.b32.xlu0 %v1598, 16
        %v1601 = vpop.permute.xlu0 %1600
        %v1603 = vsel %vm705, %v1597, %v1601
        %v1604 = vpack.c.bf16 %v1603, %v1603
        %v1605 = vld [vmem:[%s361] sm:$0xf]
        %v1606 = vld [vmem:[%s361 + $0x4] sm:$0xf]
        %v1607 = vld [vmem:[%s361 + $0x8] sm:$0xf]
        %v1608 = vld [vmem:[%s361 + $0xc] sm:$0xf]
        %v1609 = vlaneseq
        %v1610 = vshrl.u32 %v1609, 7
        %v1611 = vsub.s32 2, %v1610
        %v1612 = vrot.slane %v381, %v1611
        %v1617 = vunpack.c.l.b16 %v1605
        %v1618 = vunpack.c.l.b16 %v1606
        %v1619 = vunpack.c.l.b16 %v1607
        %v1620 = vunpack.c.l.b16 %v1608
        %v1621 = vpack.c.b16 %v1618, %v1617
        %v1622 = vpack.c.b16 %v1620, %v1619
        %v1626 = vsel %vm382, %v1604, 0
        %1628 = vmatprep.subr.bf16.mxu0 0
        %1629 = vmatpush1.bf16.msra.mxu0 0
        %1630 = vmatprep.subr.bf16.mxu0 0
        %1631 = vmatpush1.bf16.msra.mxu0 0
        %1632 = vmatprep.subr.bf16.mxu0 0
        %1633 = vmatpush1.bf16.msra.mxu0 0
        %1634 = vmatprep.subr.bf16.mxu0 0
        %1635 = vmatpush1.bf16.msra.mxu0 0
        %1636 = vmatprep.subr.bf16.mxu0 0
        %1637 = vmatpush1.bf16.msra.mxu0 0
        %1638 = vmatprep.subr.bf16.mxu0 0
        %1639 = vmatpush1.bf16.msra.mxu0 0
        %1640 = vmatprep.subr.bf16.mxu0 0
        %1641 = vmatpush1.bf16.msra.mxu0 %v1622
        %1642 = vmatprep.subr.bf16.mxu0 0
        %1643 = vmatpush1.bf16.msra.mxu0 %v1621
        %1644 = vmatprep.subr.bf16.mxu0 0
        %1645 = vmatpush2.bf16.msra.mxu0 0
        %1646 = vmatprep.subr.bf16.mxu0 0
        %1647 = vmatpush2.bf16.msra.mxu0 0
        %1648 = vmatprep.subr.bf16.mxu0 0
        %1649 = vmatpush2.bf16.msra.mxu0 0
        %1650 = vmatprep.subr.bf16.mxu0 0
        %1651 = vmatpush2.bf16.msra.mxu0 0
        %1652 = vmatprep.subr.bf16.mxu0 0
        %1653 = vmatpush2.bf16.msra.mxu0 0
        %1654 = vmatprep.subr.bf16.mxu0 0
        %1655 = vmatpush2.bf16.msra.mxu0 0
        %1656 = vmatprep.subr.bf16.mxu0 0
        %1657 = vmatpush2.bf16.msra.mxu0 0
        %1658 = vmatprep.subr.bf16.mxu0 0
        %1659 = vmatpush2.bf16.msra.mxu0 0
        %1660 = vmatprep.mubr.bf16.mxu0 0
        %1661 = vmatmul.mubr.bf16.gmra.mxu0 %v1626
        %v1662 = vpop.f32.mrf.mxu0
        %v1663 = vadd.f32 %v1612, %v1662
        %v1664 = vpop.f32.mrf.mxu0
        %v1665 = vpop.f32.mrf.mxu0
        %v1666 = vpop.f32.mrf.mxu0
        %1667 = vdwg.mxu0
        %v1668 = vadd.f32 %v380, %v1663
        %v1669 = vsel %vm382, %v1668, 0.0
        %1670 = vadd.xlane.f32.xlu0 %v1669
        %v1671 = vpop.xlane.xlu0 %1670
        %v1672 = vmul.f32 %v1671, %v386
        %v1673 = vsub.f32 %v1668, %v1672
        %v1674 = vmul.f32 %v1673, %v1673
        %v1675 = vsel %vm382, %v1674, 0.0
        %1676 = vadd.xlane.f32.xlu0 %v1675
        %v1677 = vpop.xlane.xlu0 %1676
        %v1678 = vmul.f32 %v1677, %v386
        %v1679 = vadd.f32 %v1678, 1e-05
        %v1680 = vrsqrt.pop %v1679
        %v1681 = vmul.f32 %v1673, %v1680
        %v1682 = vlaneseq
        %v1683 = vshrl.u32 %v1682, 7
        %v1684 = vsub.s32 3, %v1683
        %v1685 = vrot.slane %v381, %v1684
        %v1686 = vmul.f32 %v1681, %v1685
        %v1687 = vlaneseq
        %v1688 = vshrl.u32 %v1687, 7
        %v1689 = vsub.s32 4, %v1688
        %v1690 = vrot.slane %v381, %v1689
        %v1691 = vadd.f32 %v1686, %v1690
        %v1692 = vpack.c.bf16 %v1691, %v1691
        %v1693 = vld [vmem:[%s366] sm:$0xf]
        %v1694 = vld [vmem:[%s366 + $0x4] sm:$0xf]
        %v1695 = vld [vmem:[%s366 + $0x8] sm:$0xf]
        %v1696 = vld [vmem:[%s366 + $0xc] sm:$0xf]
        %v1697 = vlaneseq
        %v1698 = vshrl.u32 %v1697, 7
        %v1699 = vsub.s32 6, %v1698
        %v1700 = vrot.slane %v381, %v1699
        %v1705 = vunpack.c.l.b16 %v1693
        %v1706 = vunpack.c.l.b16 %v1694
        %v1707 = vunpack.c.l.b16 %v1695
        %v1708 = vunpack.c.l.b16 %v1696
        %v1709 = vpack.c.b16 %v1706, %v1705
        %v1710 = vpack.c.b16 %v1708, %v1707
        %v1714 = vsel %vm382, %v1692, 0
        %1716 = vmatprep.subr.bf16.mxu0 0
        %1717 = vmatpush1.bf16.msra.mxu0 0
        %1718 = vmatprep.subr.bf16.mxu0 0
        %1719 = vmatpush1.bf16.msra.mxu0 0
        %1720 = vmatprep.subr.bf16.mxu0 0
        %1721 = vmatpush1.bf16.msra.mxu0 0
        %1722 = vmatprep.subr.bf16.mxu0 0
        %1723 = vmatpush1.bf16.msra.mxu0 0
        %1724 = vmatprep.subr.bf16.mxu0 0
        %1725 = vmatpush1.bf16.msra.mxu0 0
        %1726 = vmatprep.subr.bf16.mxu0 0
        %1727 = vmatpush1.bf16.msra.mxu0 0
        %1728 = vmatprep.subr.bf16.mxu0 0
        %1729 = vmatpush1.bf16.msra.mxu0 %v1710
        %1730 = vmatprep.subr.bf16.mxu0 0
        %1731 = vmatpush1.bf16.msra.mxu0 %v1709
        %1732 = vmatprep.subr.bf16.mxu0 0
        %1733 = vmatpush2.bf16.msra.mxu0 0
        %1734 = vmatprep.subr.bf16.mxu0 0
        %1735 = vmatpush2.bf16.msra.mxu0 0
        %1736 = vmatprep.subr.bf16.mxu0 0
        %1737 = vmatpush2.bf16.msra.mxu0 0
        %1738 = vmatprep.subr.bf16.mxu0 0
        %1739 = vmatpush2.bf16.msra.mxu0 0
        %1740 = vmatprep.subr.bf16.mxu0 0
        %1741 = vmatpush2.bf16.msra.mxu0 0
        %1742 = vmatprep.subr.bf16.mxu0 0
        %1743 = vmatpush2.bf16.msra.mxu0 0
        %1744 = vmatprep.subr.bf16.mxu0 0
        %1745 = vmatpush2.bf16.msra.mxu0 0
        %1746 = vmatprep.subr.bf16.mxu0 0
        %1747 = vmatpush2.bf16.msra.mxu0 0
        %1748 = vmatprep.mubr.bf16.mxu0 0
        %1749 = vmatmul.mubr.bf16.gmra.mxu0 %v1714
        %v1750 = vpop.f32.mrf.mxu0
        %v1751 = vadd.f32 %v1700, %v1750
        %v1752 = vpop.f32.mrf.mxu0
        %v1753 = vpop.f32.mrf.mxu0
        %v1754 = vpop.f32.mrf.mxu0
        %1755 = vdwg.mxu0
        %v1756 = vmul.f32 %v1751, 0.5
        %v1757 = vmul.f32 %v1751, 0.70710677
        %vm1758 = vcmp.ge.f32.partialorder %v1757, 0.0
        %v1759 = vsel %vm1758, 1.0, -1.0
        %v1760 = vand.u32 2147483647, %v1757
        %v1761 = vmul.f32 %v1760, 0.3275911
        %v1762 = vadd.f32 %v1761, 1.0
        %v1763 = vrcp.pop %v1762
        %v1764 = vmul.f32 %v1763, 1.0614054
        %v1765 = vadd.f32 %v1764, -1.4531521
        %v1766 = vmul.f32 %v1763, %v1765
        %v1767 = vadd.f32 %v1766, 1.4214138
        %v1768 = vmul.f32 %v1763, %v1767
        %v1769 = vadd.f32 %v1768, -0.28449672
        %v1770 = vmul.f32 %v1763, %v1769
        %v1771 = vadd.f32 %v1770, 0.2548296
        %v1772 = vmul.f32 %v1763, %v1771
        %v1773 = vsub.f32 0.0, %v1760
        %v1774 = vmul.f32 %v1773, %v1760
        %v1775 = vmul.f32 %v1774, 1.442695
        %v1776 = vpow.pop %v1775
        %v1777 = vmul.f32 %v1772, %v1776
        %v1778 = vsub.f32 1.0, %v1777
        %v1779 = vmul.f32 %v1759, %v1778
        %v1780 = vadd.f32 %v1779, 1.0
        %v1781 = vmul.f32 %v1756, %v1780
        %v1782 = vpack.c.bf16 %v1781, %v1781
        %v1783 = vld [vmem:[%s371] sm:$0xf]
        %v1784 = vld [vmem:[%s371 + $0x4] sm:$0xf]
        %v1785 = vld [vmem:[%s371 + $0x8] sm:$0xf]
        %v1786 = vld [vmem:[%s371 + $0xc] sm:$0xf]
        %v1787 = vld [vmem:[%s371 + $0x10] sm:$0xf]
        %v1788 = vld [vmem:[%s371 + $0x14] sm:$0xf]
        %v1789 = vld [vmem:[%s371 + $0x18] sm:$0xf]
        %v1790 = vld [vmem:[%s371 + $0x1c] sm:$0xf]
        %v1791 = vlaneseq
        %v1792 = vshrl.u32 %v1791, 7
        %v1793 = vsub.s32 5, %v1792
        %v1794 = vrot.slane %v381, %v1793
        %v1803 = vunpack.c.l.b16 %v1783
        %v1804 = vunpack.c.l.b16 %v1784
        %v1805 = vunpack.c.l.b16 %v1785
        %v1806 = vunpack.c.l.b16 %v1786
        %v1807 = vunpack.c.l.b16 %v1787
        %v1808 = vunpack.c.l.b16 %v1788
        %v1809 = vunpack.c.l.b16 %v1789
        %v1810 = vunpack.c.l.b16 %v1790
        %v1811 = vpack.c.b16 %v1804, %v1803
        %v1812 = vpack.c.b16 %v1806, %v1805
        %v1813 = vpack.c.b16 %v1808, %v1807
        %v1814 = vpack.c.b16 %v1810, %v1809
        %vm1819 = vcmask 523264
        %v1821 = vsel %vm1819, %v1782, 0
        %1823 = vmatprep.subr.bf16.mxu0 0
        %1824 = vmatpush1.bf16.msra.mxu0 0
        %1825 = vmatprep.subr.bf16.mxu0 0
        %1826 = vmatpush1.bf16.msra.mxu0 0
        %1827 = vmatprep.subr.bf16.mxu0 0
        %1828 = vmatpush1.bf16.msra.mxu0 0
        %1829 = vmatprep.subr.bf16.mxu0 0
        %1830 = vmatpush1.bf16.msra.mxu0 0
        %1831 = vmatprep.subr.bf16.mxu0 0
        %1832 = vmatpush1.bf16.msra.mxu0 %v1814
        %1833 = vmatprep.subr.bf16.mxu0 0
        %1834 = vmatpush1.bf16.msra.mxu0 %v1813
        %1835 = vmatprep.subr.bf16.mxu0 0
        %1836 = vmatpush1.bf16.msra.mxu0 %v1812
        %1837 = vmatprep.subr.bf16.mxu0 0
        %1838 = vmatpush1.bf16.msra.mxu0 %v1811
        %1839 = vmatprep.subr.bf16.mxu0 0
        %1840 = vmatpush2.bf16.msra.mxu0 0
        %1841 = vmatprep.subr.bf16.mxu0 0
        %1842 = vmatpush2.bf16.msra.mxu0 0
        %1843 = vmatprep.subr.bf16.mxu0 0
        %1844 = vmatpush2.bf16.msra.mxu0 0
        %1845 = vmatprep.subr.bf16.mxu0 0
        %1846 = vmatpush2.bf16.msra.mxu0 0
        %1847 = vmatprep.subr.bf16.mxu0 0
        %1848 = vmatpush2.bf16.msra.mxu0 0
        %1849 = vmatprep.subr.bf16.mxu0 0
        %1850 = vmatpush2.bf16.msra.mxu0 0
        %1851 = vmatprep.subr.bf16.mxu0 0
        %1852 = vmatpush2.bf16.msra.mxu0 0
        %1853 = vmatprep.subr.bf16.mxu0 0
        %1854 = vmatpush2.bf16.msra.mxu0 0
        %1855 = vmatprep.mubr.bf16.mxu0 0
        %1856 = vmatmul.mubr.bf16.gmra.mxu0 %v1821
        %v1857 = vpop.f32.mrf.mxu0
        %v1858 = vadd.f32 %v1794, %v1857
        %v1859 = vpop.f32.mrf.mxu0
        %v1860 = vpop.f32.mrf.mxu0
        %v1861 = vpop.f32.mrf.mxu0
        %1862 = vdwg.mxu0
        %v1863 = vadd.f32 %v1668, %v1858
        %p1864 = scmp.lt.s32.totalorder %s27, 1
        // Predicated region
        $region57: #{tpu_custom_call.1} parent=43 // pred_check
          %p1865 = pneg %p1864
        $region58: #{tpu_custom_call.1} parent=43 // pred_check_branch
          %1867 = sbr.rel (%p1865) target = $region60
        $region59: #{tpu_custom_call.1} parent=43 // pred_region
          %1868 = vst.msk [vmem:[#allocation2] sm:$0xff] %vm382, %v1863
        $region60: #{tpu_custom_call.1} parent=43 // pred_fallthru
          _
        %p1869 = scmp.eq.s32.totalorder %s27, 1
        // Predicated region
        $region61: #{tpu_custom_call.1} parent=43 // pred_check
          %p1870 = pneg %p1869
        $region62: #{tpu_custom_call.1} parent=43 // pred_check_branch
          %1872 = sbr.rel (%p1870) target = $region64
        $region63: #{tpu_custom_call.1} parent=43 // pred_region
          %1873 = vst.msk [vmem:[#allocation8] sm:$0xff] %vm382, %v1863
        $region64: #{tpu_custom_call.1} parent=43 // pred_fallthru
          _
        // Predicated region
        $region65: #{tpu_custom_call.1} parent=43 // pred_check
          %p1874 = pneg %p208
        $region66: #{tpu_custom_call.1} parent=43 // pred_check_branch
          %1876 = sbr.rel (%p1874) target = $region68
        $region67: #{tpu_custom_call.1} parent=43 // pred_region
          %s1878 = ssub.s32 128, 128
          %1879 = vsyncadd [#allocation5], %s1878
          %s1880 = smul.addr %s26, 128
          %s1881 = scalar_lea.hbm %s6, %s1880
          %s1883 = sshll.u32 [#allocation8], 4
          %s1884 = int_to_ptr.vmem [resolvable:$true] %s1883
          %1886 = dma.vmem_to_hbm [thread:$0]  %s1884, 128, %s1881, [#allocation5]
        $region68: #{tpu_custom_call.1} parent=43 // pred_fallthru
          _
        // Predicated region
        $region69: #{tpu_custom_call.1} parent=43 // pred_check
          %p1887 = pneg %p208
        $region70: #{tpu_custom_call.1} parent=43 // pred_check_branch
          %1889 = sbr.rel (%p1887) target = $region72
        $region71: #{tpu_custom_call.1} parent=43 // pred_region
          %1890 = dma.done [#allocation5], 128
        $region72: #{tpu_custom_call.1} parent=43 // pred_fallthru
          _
      $region44: #{tpu_custom_call.1} parent=5 // pred_fallthru
        _
      %p1891 = scmp.le.s32.totalorder 2, %s17
      // Predicated region
      $region73: #{tpu_custom_call.1} parent=5 // pred_check
        %p1892 = pneg %p1891
      $region74: #{tpu_custom_call.1} parent=5 // pred_check_branch
        %1894 = sbr.rel (%p1892) target = $region76
      $region75: #{tpu_custom_call.1} parent=5 // pred_region
        %s1895 = ssub.s32 %s17, 2
      $region76: #{tpu_custom_call.1} parent=5 // pred_fallthru
        _
    $region6: #{tpu_custom_call.1} parent=1 // loop_footer
      %s21 = sadd.s32 1, %s17
    $region7: #{tpu_custom_call.1} parent=1 // loop_footer_branch
      %16 = sbr.rel target = $region3
    $region8: #{tpu_custom_call.1} parent=1 // loop_exit
      _
    %1896 = vsyncpa [#allocation4], 1
    %s1897 = scalar_lea.sflag [#allocation4], 1
    %1898 = vsyncpa %s1897, 1
    %1899 = vsyncpa [#allocation7], 1
    %s1900 = scalar_lea.sflag [#allocation7], 1
    %1901 = vsyncpa %s1900, 1
    %1902 = vsyncpa [#allocation5], 1
    %s1903 = scalar_lea.sflag [#allocation5], 1
    %1904 = vsyncpa %s1903, 1

</llo_original>
